<compile_context>
chip_gen: v7x
topology: tpu7x:2x2x1
jax: 0.10.0
libtpu: 0.0.40
codegen_flags: <defaults>
</compile_context>

<pallas_src>
import jax
import jax.numpy as jnp
import numpy as np
from jax.experimental import pallas as pl
from jax.experimental.pallas import tpu as pltpu


def attention_lstm_kernel(x_ref,       # (B*S, E)  batch-major flattened input
                          wih_ref,     # (E, 4H)   fused input->gate weights  [i|f|g|o]
                          whh_ref,     # (H, 4H)   fused hidden->gate weights [i|f|g|o]
                          b_ref,       # (1, 4H)   combined gate bias (b_ih + b_hh)
                          wlab_ref,    # (H, 128)  label weight, transposed + lane-padded
                          blab_ref,    # (1, 128)  label bias, lane-padded
                          logits_ref,  # (B, 128)  lane-dense output tile
                          lstm_out_ref):  # VMEM (B, S, H) per-step hidden states
    B, S, H = lstm_out_ref.shape
    H4 = whh_ref.shape[1]

    # ---- Hoisted, fused input projection for all timesteps (one MXU matmul) ----
    xproj = (jnp.dot(x_ref[...], wih_ref[...], preferred_element_type=jnp.float32)
             + b_ref[...]).reshape(B, S, H4)                  # (B, S, 4H)

    whh = whh_ref[...]                                        # keep resident in vregs

    # ---- Recurrence: statically unrolled, h/c live in vregs ----
    h = jnp.zeros((B, H), jnp.float32)
    c = jnp.zeros((B, H), jnp.float32)
    for t in range(S):
        gates = xproj[:, t, :] + jnp.dot(h, whh, preferred_element_type=jnp.float32)  # (B,4H)
        i_g = jax.nn.sigmoid(gates[:, 0 * H:1 * H])
        f_g = jax.nn.sigmoid(gates[:, 1 * H:2 * H])
        g_g = jnp.tanh(gates[:, 2 * H:3 * H])
        o_g = jax.nn.sigmoid(gates[:, 3 * H:4 * H])
        c = f_g * c + i_g * g_g
        h = o_g * jnp.tanh(c)
        lstm_out_ref[:, t, :] = h

    lstm_out = lstm_out_ref[...]                              # (B, S, H)

    # ---- Attention vs. final hidden state (flash-style batched MXU matmuls) ----
    q = h[:, None, :]                                         # (B, 1, H)
    attn = jnp.einsum('bqh,bsh->bqs', q, lstm_out,
                      preferred_element_type=jnp.float32)     # (B, 1, S)
    m = jnp.max(attn, axis=-1, keepdims=True)
    e = jnp.exp(attn - m)
    soft = e / jnp.sum(e, axis=-1, keepdims=True)             # softmax over sequence
    ctx = jnp.einsum('bqs,bsh->bqh', soft, lstm_out,
                     preferred_element_type=jnp.float32)      # (B, 1, H)
    new_hidden = ctx[:, 0, :]                                 # (B, H)

    # ---- Linear head: lane-dense (B, 128) store ----
    logits_ref[...] = (jnp.dot(new_hidden, wlab_ref[...],
                               preferred_element_type=jnp.float32) + blab_ref[...])


O_PAD = 128  # lane-dense width for the logits tile


@jax.jit
def attention_model_forward(x_bse, params):
    """x_bse: (batch, seq, embed) float32, same layout as the PyTorch forward input."""
    wih, whh, b, wlab, blab = params
    B, S, E = x_bse.shape
    H = whh.shape[0]
    O = wlab.shape[1]

    x_flat = x_bse.reshape(B * S, E)                           # batch-major flatten
    wlab_p = jnp.zeros((H, O_PAD), jnp.float32).at[:, :O].set(wlab)
    blab_p = jnp.zeros((1, O_PAD), jnp.float32).at[:, :O].set(blab)

    vmem = pl.BlockSpec(memory_space=pltpu.MemorySpace.VMEM)
    logits_padded = pl.pallas_call(
        attention_lstm_kernel,
        out_shape=jax.ShapeDtypeStruct((B, O_PAD), jnp.float32),
        in_specs=[vmem] * 6,
        out_specs=vmem,
        scratch_shapes=[pltpu.VMEM((B, S, H), jnp.float32)],
    )(x_flat, wih, whh, b, wlab_p, blab_p)
    return logits_padded[:, :O]


def make_params(key, embedding_length, hidden_size, output_size):
    """Mimics nn.LSTM / nn.Linear uniform(-1/sqrt(H), 1/sqrt(H)) init, packed for the kernel."""
    E, H, O = embedding_length, hidden_size, output_size
    k = 1.0 / np.sqrt(H)
    keys = jax.random.split(key, 6)
    # PyTorch weight_ih_l0 is (4H, E) with gate blocks [i; f; g; o] -> model as (4, H, E).
    w_ih = jax.random.uniform(keys[0], (4, H, E), jnp.float32, -k, k)
    w_hh = jax.random.uniform(keys[1], (4, H, H), jnp.float32, -k, k)
    b_ih = jax.random.uniform(keys[2], (4, H), jnp.float32, -k, k)
    b_hh = jax.random.uniform(keys[3], (4, H), jnp.float32, -k, k)
    # Fused layouts so the kernel computes x @ Wih + h @ Whh + b with gates along lanes.
    wih_f = jnp.transpose(w_ih, (2, 0, 1)).reshape(E, 4 * H)   # (E, 4H)
    whh_f = jnp.transpose(w_hh, (2, 0, 1)).reshape(H, 4 * H)   # (H, 4H)
    b_f = (b_ih + b_hh).reshape(1, 4 * H)                      # (1, 4H)
    # Linear(hidden_size, output_size): weight (O, H), bias (O,) -> stored transposed.
    w_lab = jax.random.uniform(keys[4], (O, H), jnp.float32, -k, k)
    b_lab = jax.random.uniform(keys[5], (O,), jnp.float32, -k, k)
    wlab = jnp.transpose(w_lab)                                # (H, O)
    blab = b_lab[None, :]                                      # (1, O)
    return (wih_f, whh_f, b_f, wlab, blab)


def reference_forward(x_bse, params):
    """Pure-JAX reference replicating the PyTorch semantics (for validation)."""
    hp = jax.lax.Precision.HIGHEST
    wih, whh, b, wlab, blab = params
    B, S, E = x_bse.shape
    H = whh.shape[0]
    x_sbe = jnp.transpose(x_bse, (1, 0, 2))
    h = jnp.zeros((B, H), jnp.float32)
    c = jnp.zeros((B, H), jnp.float32)
    outs = []
    for t in range(S):
        x_t = x_sbe[t]
        gates = (jnp.dot(x_t, wih, precision=hp) + jnp.dot(h, whh, precision=hp) + b)
        i_g = jax.nn.sigmoid(gates[:, 0 * H:1 * H])
        f_g = jax.nn.sigmoid(gates[:, 1 * H:2 * H])
        g_g = jnp.tanh(gates[:, 2 * H:3 * H])
        o_g = jax.nn.sigmoid(gates[:, 3 * H:4 * H])
        c = f_g * c + i_g * g_g
        h = o_g * jnp.tanh(c)
        outs.append(h)
    lstm_out = jnp.stack(outs, axis=1)                         # (B, S, H)
    attn = jnp.einsum('bsh,bh->bs', lstm_out, h, precision=hp)
    soft = jax.nn.softmax(attn, axis=1)
    new_hidden = jnp.einsum('bsh,bs->bh', lstm_out, soft, precision=hp)
    return jnp.dot(new_hidden, wlab, precision=hp) + blab


if __name__ == "__main__":
    batch_size = 2
    seq_len = 8
    embedding_length = 32
    hidden_size = 32
    output_sizes = (2,)

    root = jax.random.PRNGKey(0)
    k_x, k_p = jax.random.split(root)
    x = jax.random.normal(k_x, (batch_size, seq_len, embedding_length), jnp.float32)
    params = make_params(k_p, embedding_length, hidden_size, output_sizes[0])

    logits = attention_model_forward(x, params)
    logits = jax.block_until_ready(logits)
    assert logits.shape == (batch_size, output_sizes[0])

    ref = reference_forward(x, params)
    np.testing.assert_allclose(np.asarray(logits), np.asarray(ref), rtol=5e-4, atol=5e-4)

    print("KERNEL_OK")
</pallas_src>

<mosaic_0001>
module attributes {stable_mosaic.version = 11 : i64} {
  func.func @attention_lstm_kernel(%arg0: memref<16x32xf32, #tpu.memory_space<vmem>>, %arg1: memref<32x128xf32, #tpu.memory_space<vmem>>, %arg2: memref<32x128xf32, #tpu.memory_space<vmem>>, %arg3: memref<1x128xf32, #tpu.memory_space<vmem>>, %arg4: memref<32x128xf32, #tpu.memory_space<vmem>>, %arg5: memref<1x128xf32, #tpu.memory_space<vmem>>, %arg6: memref<2x128xf32, #tpu.memory_space<vmem>>, %arg7: memref<2x8x32xf32, #tpu.memory_space<vmem>>) attributes {dimension_semantics = [], scalar_prefetch = 0 : i64, scratch_operands = 1 : i64, tpu.core_type = #tpu.core_type<tc>} {
    %c0 = arith.constant 0 : index
    %c0_0 = arith.constant 0 : index
    %0 = vector.load %arg0[%c0, %c0_0] : memref<16x32xf32, #tpu.memory_space<vmem>>, vector<16x32xf32>
    %c0_1 = arith.constant 0 : index
    %c0_2 = arith.constant 0 : index
    %1 = vector.load %arg1[%c0_1, %c0_2] : memref<32x128xf32, #tpu.memory_space<vmem>>, vector<32x128xf32>
    %cst = arith.constant dense<0.000000e+00> : vector<16x128xf32>
    %2 = tpu.matmul %0, %1, %cst {dimension_numbers = #tpu.dot_dimension_numbers<[1], [0], [0], [1], [0, 0, 1, 1], [], []>} : vector<16x32xf32>, vector<32x128xf32>, vector<16x128xf32> -> vector<16x128xf32>
    %c0_3 = arith.constant 0 : index
    %c0_4 = arith.constant 0 : index
    %3 = vector.load %arg3[%c0_3, %c0_4] : memref<1x128xf32, #tpu.memory_space<vmem>>, vector<1x128xf32>
    %4 = vector.broadcast %3 : vector<1x128xf32> to vector<16x128xf32>
    %5 = arith.addf %2, %4 : vector<16x128xf32>
    %6 = vector.shape_cast %5 : vector<16x128xf32> to vector<2x8x128xf32>
    %c0_5 = arith.constant 0 : index
    %c0_6 = arith.constant 0 : index
    %7 = vector.load %arg2[%c0_5, %c0_6] : memref<32x128xf32, #tpu.memory_space<vmem>>, vector<32x128xf32>
    %cst_7 = arith.constant 0.000000e+00 : f32
    %8 = vector.broadcast %cst_7 : f32 to vector<2x32xf32>
    %cst_8 = arith.constant 0.000000e+00 : f32
    %9 = vector.broadcast %cst_8 : f32 to vector<2x32xf32>
    %10 = vector.extract_strided_slice %6 {offsets = [0, 0, 0], sizes = [2, 1, 128], strides = [1, 1, 1]} : vector<2x8x128xf32> to vector<2x1x128xf32>
    %11 = vector.shape_cast %10 : vector<2x1x128xf32> to vector<2x128xf32>
    %cst_9 = arith.constant dense<0.000000e+00> : vector<2x128xf32>
    %12 = tpu.matmul %8, %7, %cst_9 {dimension_numbers = #tpu.dot_dimension_numbers<[1], [0], [0], [1], [0, 0, 1, 1], [], []>} : vector<2x32xf32>, vector<32x128xf32>, vector<2x128xf32> -> vector<2x128xf32>
    %13 = arith.addf %11, %12 : vector<2x128xf32>
    %14 = vector.extract_strided_slice %13 {offsets = [0, 0], sizes = [2, 32], strides = [1, 1]} : vector<2x128xf32> to vector<2x32xf32>
    %15 = arith.negf %14 : vector<2x32xf32>
    %16 = math.exp %15 : vector<2x32xf32>
    %cst_10 = arith.constant 1.000000e+00 : f32
    %17 = vector.broadcast %cst_10 : f32 to vector<2x32xf32>
    %18 = arith.addf %17, %16 : vector<2x32xf32>
    %19 = arith.divf %17, %18 : vector<2x32xf32>
    %20 = vector.extract_strided_slice %13 {offsets = [0, 32], sizes = [2, 32], strides = [1, 1]} : vector<2x128xf32> to vector<2x32xf32>
    %21 = arith.negf %20 : vector<2x32xf32>
    %22 = math.exp %21 : vector<2x32xf32>
    %cst_11 = arith.constant 1.000000e+00 : f32
    %23 = vector.broadcast %cst_11 : f32 to vector<2x32xf32>
    %24 = arith.addf %23, %22 : vector<2x32xf32>
    %25 = arith.divf %23, %24 : vector<2x32xf32>
    %26 = vector.extract_strided_slice %13 {offsets = [0, 64], sizes = [2, 32], strides = [1, 1]} : vector<2x128xf32> to vector<2x32xf32>
    %27 = math.tanh %26 : vector<2x32xf32>
    %28 = vector.extract_strided_slice %13 {offsets = [0, 96], sizes = [2, 32], strides = [1, 1]} : vector<2x128xf32> to vector<2x32xf32>
    %29 = arith.negf %28 : vector<2x32xf32>
    %30 = math.exp %29 : vector<2x32xf32>
    %cst_12 = arith.constant 1.000000e+00 : f32
    %31 = vector.broadcast %cst_12 : f32 to vector<2x32xf32>
    %32 = arith.addf %31, %30 : vector<2x32xf32>
    %33 = arith.divf %31, %32 : vector<2x32xf32>
    %34 = arith.mulf %25, %9 : vector<2x32xf32>
    %35 = arith.mulf %19, %27 : vector<2x32xf32>
    %36 = arith.addf %34, %35 : vector<2x32xf32>
    %37 = math.tanh %36 : vector<2x32xf32>
    %38 = arith.mulf %33, %37 : vector<2x32xf32>
    %c0_13 = arith.constant 0 : index
    %c0_14 = arith.constant 0 : index
    %c0_15 = arith.constant 0 : index
    %39 = vector.load %arg7[%c0_13, %c0_14, %c0_15] : memref<2x8x32xf32, #tpu.memory_space<vmem>>, vector<2x1x32xf32>
    %40 = vector.shape_cast %39 : vector<2x1x32xf32> to vector<2x32xf32>
    %41 = vector.shape_cast %38 : vector<2x32xf32> to vector<2x1x32xf32>
    tpu.vector_store %arg7[%c0_13, %c0_14, %c0_15], %41 {strides = array<i32>} : memref<2x8x32xf32, #tpu.memory_space<vmem>>, vector<2x1x32xf32>,
    %42 = vector.extract_strided_slice %6 {offsets = [0, 1, 0], sizes = [2, 1, 128], strides = [1, 1, 1]} : vector<2x8x128xf32> to vector<2x1x128xf32>
    %43 = vector.shape_cast %42 : vector<2x1x128xf32> to vector<2x128xf32>
    %cst_16 = arith.constant dense<0.000000e+00> : vector<2x128xf32>
    %44 = tpu.matmul %38, %7, %cst_16 {dimension_numbers = #tpu.dot_dimension_numbers<[1], [0], [0], [1], [0, 0, 1, 1], [], []>} : vector<2x32xf32>, vector<32x128xf32>, vector<2x128xf32> -> vector<2x128xf32>
    %45 = arith.addf %43, %44 : vector<2x128xf32>
    %46 = vector.extract_strided_slice %45 {offsets = [0, 0], sizes = [2, 32], strides = [1, 1]} : vector<2x128xf32> to vector<2x32xf32>
    %47 = arith.negf %46 : vector<2x32xf32>
    %48 = math.exp %47 : vector<2x32xf32>
    %cst_17 = arith.constant 1.000000e+00 : f32
    %49 = vector.broadcast %cst_17 : f32 to vector<2x32xf32>
    %50 = arith.addf %49, %48 : vector<2x32xf32>
    %51 = arith.divf %49, %50 : vector<2x32xf32>
    %52 = vector.extract_strided_slice %45 {offsets = [0, 32], sizes = [2, 32], strides = [1, 1]} : vector<2x128xf32> to vector<2x32xf32>
    %53 = arith.negf %52 : vector<2x32xf32>
    %54 = math.exp %53 : vector<2x32xf32>
    %cst_18 = arith.constant 1.000000e+00 : f32
    %55 = vector.broadcast %cst_18 : f32 to vector<2x32xf32>
    %56 = arith.addf %55, %54 : vector<2x32xf32>
    %57 = arith.divf %55, %56 : vector<2x32xf32>
    %58 = vector.extract_strided_slice %45 {offsets = [0, 64], sizes = [2, 32], strides = [1, 1]} : vector<2x128xf32> to vector<2x32xf32>
    %59 = math.tanh %58 : vector<2x32xf32>
    %60 = vector.extract_strided_slice %45 {offsets = [0, 96], sizes = [2, 32], strides = [1, 1]} : vector<2x128xf32> to vector<2x32xf32>
    %61 = arith.negf %60 : vector<2x32xf32>
    %62 = math.exp %61 : vector<2x32xf32>
    %cst_19 = arith.constant 1.000000e+00 : f32
    %63 = vector.broadcast %cst_19 : f32 to vector<2x32xf32>
    %64 = arith.addf %63, %62 : vector<2x32xf32>
    %65 = arith.divf %63, %64 : vector<2x32xf32>
    %66 = arith.mulf %57, %36 : vector<2x32xf32>
    %67 = arith.mulf %51, %59 : vector<2x32xf32>
    %68 = arith.addf %66, %67 : vector<2x32xf32>
    %69 = math.tanh %68 : vector<2x32xf32>
    %70 = arith.mulf %65, %69 : vector<2x32xf32>
    %c0_20 = arith.constant 0 : index
    %c1 = arith.constant 1 : index
    %c0_21 = arith.constant 0 : index
    %71 = vector.load %arg7[%c0_20, %c1, %c0_21] : memref<2x8x32xf32, #tpu.memory_space<vmem>>, vector<2x1x32xf32>
    %72 = vector.shape_cast %71 : vector<2x1x32xf32> to vector<2x32xf32>
    %73 = vector.shape_cast %70 : vector<2x32xf32> to vector<2x1x32xf32>
    tpu.vector_store %arg7[%c0_20, %c1, %c0_21], %73 {strides = array<i32>} : memref<2x8x32xf32, #tpu.memory_space<vmem>>, vector<2x1x32xf32>,
    %74 = vector.extract_strided_slice %6 {offsets = [0, 2, 0], sizes = [2, 1, 128], strides = [1, 1, 1]} : vector<2x8x128xf32> to vector<2x1x128xf32>
    %75 = vector.shape_cast %74 : vector<2x1x128xf32> to vector<2x128xf32>
    %cst_22 = arith.constant dense<0.000000e+00> : vector<2x128xf32>
    %76 = tpu.matmul %70, %7, %cst_22 {dimension_numbers = #tpu.dot_dimension_numbers<[1], [0], [0], [1], [0, 0, 1, 1], [], []>} : vector<2x32xf32>, vector<32x128xf32>, vector<2x128xf32> -> vector<2x128xf32>
    %77 = arith.addf %75, %76 : vector<2x128xf32>
    %78 = vector.extract_strided_slice %77 {offsets = [0, 0], sizes = [2, 32], strides = [1, 1]} : vector<2x128xf32> to vector<2x32xf32>
    %79 = arith.negf %78 : vector<2x32xf32>
    %80 = math.exp %79 : vector<2x32xf32>
    %cst_23 = arith.constant 1.000000e+00 : f32
    %81 = vector.broadcast %cst_23 : f32 to vector<2x32xf32>
    %82 = arith.addf %81, %80 : vector<2x32xf32>
    %83 = arith.divf %81, %82 : vector<2x32xf32>
    %84 = vector.extract_strided_slice %77 {offsets = [0, 32], sizes = [2, 32], strides = [1, 1]} : vector<2x128xf32> to vector<2x32xf32>
    %85 = arith.negf %84 : vector<2x32xf32>
    %86 = math.exp %85 : vector<2x32xf32>
    %cst_24 = arith.constant 1.000000e+00 : f32
    %87 = vector.broadcast %cst_24 : f32 to vector<2x32xf32>
    %88 = arith.addf %87, %86 : vector<2x32xf32>
    %89 = arith.divf %87, %88 : vector<2x32xf32>
    %90 = vector.extract_strided_slice %77 {offsets = [0, 64], sizes = [2, 32], strides = [1, 1]} : vector<2x128xf32> to vector<2x32xf32>
    %91 = math.tanh %90 : vector<2x32xf32>
    %92 = vector.extract_strided_slice %77 {offsets = [0, 96], sizes = [2, 32], strides = [1, 1]} : vector<2x128xf32> to vector<2x32xf32>
    %93 = arith.negf %92 : vector<2x32xf32>
    %94 = math.exp %93 : vector<2x32xf32>
    %cst_25 = arith.constant 1.000000e+00 : f32
    %95 = vector.broadcast %cst_25 : f32 to vector<2x32xf32>
    %96 = arith.addf %95, %94 : vector<2x32xf32>
    %97 = arith.divf %95, %96 : vector<2x32xf32>
    %98 = arith.mulf %89, %68 : vector<2x32xf32>
    %99 = arith.mulf %83, %91 : vector<2x32xf32>
    %100 = arith.addf %98, %99 : vector<2x32xf32>
    %101 = math.tanh %100 : vector<2x32xf32>
    %102 = arith.mulf %97, %101 : vector<2x32xf32>
    %c0_26 = arith.constant 0 : index
    %c2 = arith.constant 2 : index
    %c0_27 = arith.constant 0 : index
    %103 = vector.load %arg7[%c0_26, %c2, %c0_27] : memref<2x8x32xf32, #tpu.memory_space<vmem>>, vector<2x1x32xf32>
    %104 = vector.shape_cast %103 : vector<2x1x32xf32> to vector<2x32xf32>
    %105 = vector.shape_cast %102 : vector<2x32xf32> to vector<2x1x32xf32>
    tpu.vector_store %arg7[%c0_26, %c2, %c0_27], %105 {strides = array<i32>} : memref<2x8x32xf32, #tpu.memory_space<vmem>>, vector<2x1x32xf32>,
    %106 = vector.extract_strided_slice %6 {offsets = [0, 3, 0], sizes = [2, 1, 128], strides = [1, 1, 1]} : vector<2x8x128xf32> to vector<2x1x128xf32>
    %107 = vector.shape_cast %106 : vector<2x1x128xf32> to vector<2x128xf32>
    %cst_28 = arith.constant dense<0.000000e+00> : vector<2x128xf32>
    %108 = tpu.matmul %102, %7, %cst_28 {dimension_numbers = #tpu.dot_dimension_numbers<[1], [0], [0], [1], [0, 0, 1, 1], [], []>} : vector<2x32xf32>, vector<32x128xf32>, vector<2x128xf32> -> vector<2x128xf32>
    %109 = arith.addf %107, %108 : vector<2x128xf32>
    %110 = vector.extract_strided_slice %109 {offsets = [0, 0], sizes = [2, 32], strides = [1, 1]} : vector<2x128xf32> to vector<2x32xf32>
    %111 = arith.negf %110 : vector<2x32xf32>
    %112 = math.exp %111 : vector<2x32xf32>
    %cst_29 = arith.constant 1.000000e+00 : f32
    %113 = vector.broadcast %cst_29 : f32 to vector<2x32xf32>
    %114 = arith.addf %113, %112 : vector<2x32xf32>
    %115 = arith.divf %113, %114 : vector<2x32xf32>
    %116 = vector.extract_strided_slice %109 {offsets = [0, 32], sizes = [2, 32], strides = [1, 1]} : vector<2x128xf32> to vector<2x32xf32>
    %117 = arith.negf %116 : vector<2x32xf32>
    %118 = math.exp %117 : vector<2x32xf32>
    %cst_30 = arith.constant 1.000000e+00 : f32
    %119 = vector.broadcast %cst_30 : f32 to vector<2x32xf32>
    %120 = arith.addf %119, %118 : vector<2x32xf32>
    %121 = arith.divf %119, %120 : vector<2x32xf32>
    %122 = vector.extract_strided_slice %109 {offsets = [0, 64], sizes = [2, 32], strides = [1, 1]} : vector<2x128xf32> to vector<2x32xf32>
    %123 = math.tanh %122 : vector<2x32xf32>
    %124 = vector.extract_strided_slice %109 {offsets = [0, 96], sizes = [2, 32], strides = [1, 1]} : vector<2x128xf32> to vector<2x32xf32>
    %125 = arith.negf %124 : vector<2x32xf32>
    %126 = math.exp %125 : vector<2x32xf32>
    %cst_31 = arith.constant 1.000000e+00 : f32
    %127 = vector.broadcast %cst_31 : f32 to vector<2x32xf32>
    %128 = arith.addf %127, %126 : vector<2x32xf32>
    %129 = arith.divf %127, %128 : vector<2x32xf32>
    %130 = arith.mulf %121, %100 : vector<2x32xf32>
    %131 = arith.mulf %115, %123 : vector<2x32xf32>
    %132 = arith.addf %130, %131 : vector<2x32xf32>
    %133 = math.tanh %132 : vector<2x32xf32>
    %134 = arith.mulf %129, %133 : vector<2x32xf32>
    %c0_32 = arith.constant 0 : index
    %c3 = arith.constant 3 : index
    %c0_33 = arith.constant 0 : index
    %135 = vector.load %arg7[%c0_32, %c3, %c0_33] : memref<2x8x32xf32, #tpu.memory_space<vmem>>, vector<2x1x32xf32>
    %136 = vector.shape_cast %135 : vector<2x1x32xf32> to vector<2x32xf32>
    %137 = vector.shape_cast %134 : vector<2x32xf32> to vector<2x1x32xf32>
    tpu.vector_store %arg7[%c0_32, %c3, %c0_33], %137 {strides = array<i32>} : memref<2x8x32xf32, #tpu.memory_space<vmem>>, vector<2x1x32xf32>,
    %138 = vector.extract_strided_slice %6 {offsets = [0, 4, 0], sizes = [2, 1, 128], strides = [1, 1, 1]} : vector<2x8x128xf32> to vector<2x1x128xf32>
    %139 = vector.shape_cast %138 : vector<2x1x128xf32> to vector<2x128xf32>
    %cst_34 = arith.constant dense<0.000000e+00> : vector<2x128xf32>
    %140 = tpu.matmul %134, %7, %cst_34 {dimension_numbers = #tpu.dot_dimension_numbers<[1], [0], [0], [1], [0, 0, 1, 1], [], []>} : vector<2x32xf32>, vector<32x128xf32>, vector<2x128xf32> -> vector<2x128xf32>
    %141 = arith.addf %139, %140 : vector<2x128xf32>
    %142 = vector.extract_strided_slice %141 {offsets = [0, 0], sizes = [2, 32], strides = [1, 1]} : vector<2x128xf32> to vector<2x32xf32>
    %143 = arith.negf %142 : vector<2x32xf32>
    %144 = math.exp %143 : vector<2x32xf32>
    %cst_35 = arith.constant 1.000000e+00 : f32
    %145 = vector.broadcast %cst_35 : f32 to vector<2x32xf32>
    %146 = arith.addf %145, %144 : vector<2x32xf32>
    %147 = arith.divf %145, %146 : vector<2x32xf32>
    %148 = vector.extract_strided_slice %141 {offsets = [0, 32], sizes = [2, 32], strides = [1, 1]} : vector<2x128xf32> to vector<2x32xf32>
    %149 = arith.negf %148 : vector<2x32xf32>
    %150 = math.exp %149 : vector<2x32xf32>
    %cst_36 = arith.constant 1.000000e+00 : f32
    %151 = vector.broadcast %cst_36 : f32 to vector<2x32xf32>
    %152 = arith.addf %151, %150 : vector<2x32xf32>
    %153 = arith.divf %151, %152 : vector<2x32xf32>
    %154 = vector.extract_strided_slice %141 {offsets = [0, 64], sizes = [2, 32], strides = [1, 1]} : vector<2x128xf32> to vector<2x32xf32>
    %155 = math.tanh %154 : vector<2x32xf32>
    %156 = vector.extract_strided_slice %141 {offsets = [0, 96], sizes = [2, 32], strides = [1, 1]} : vector<2x128xf32> to vector<2x32xf32>
    %157 = arith.negf %156 : vector<2x32xf32>
    %158 = math.exp %157 : vector<2x32xf32>
    %cst_37 = arith.constant 1.000000e+00 : f32
    %159 = vector.broadcast %cst_37 : f32 to vector<2x32xf32>
    %160 = arith.addf %159, %158 : vector<2x32xf32>
    %161 = arith.divf %159, %160 : vector<2x32xf32>
    %162 = arith.mulf %153, %132 : vector<2x32xf32>
    %163 = arith.mulf %147, %155 : vector<2x32xf32>
    %164 = arith.addf %162, %163 : vector<2x32xf32>
    %165 = math.tanh %164 : vector<2x32xf32>
    %166 = arith.mulf %161, %165 : vector<2x32xf32>
    %c0_38 = arith.constant 0 : index
    %c4 = arith.constant 4 : index
    %c0_39 = arith.constant 0 : index
    %167 = vector.load %arg7[%c0_38, %c4, %c0_39] : memref<2x8x32xf32, #tpu.memory_space<vmem>>, vector<2x1x32xf32>
    %168 = vector.shape_cast %167 : vector<2x1x32xf32> to vector<2x32xf32>
    %169 = vector.shape_cast %166 : vector<2x32xf32> to vector<2x1x32xf32>
    tpu.vector_store %arg7[%c0_38, %c4, %c0_39], %169 {strides = array<i32>} : memref<2x8x32xf32, #tpu.memory_space<vmem>>, vector<2x1x32xf32>,
    %170 = vector.extract_strided_slice %6 {offsets = [0, 5, 0], sizes = [2, 1, 128], strides = [1, 1, 1]} : vector<2x8x128xf32> to vector<2x1x128xf32>
    %171 = vector.shape_cast %170 : vector<2x1x128xf32> to vector<2x128xf32>
    %cst_40 = arith.constant dense<0.000000e+00> : vector<2x128xf32>
    %172 = tpu.matmul %166, %7, %cst_40 {dimension_numbers = #tpu.dot_dimension_numbers<[1], [0], [0], [1], [0, 0, 1, 1], [], []>} : vector<2x32xf32>, vector<32x128xf32>, vector<2x128xf32> -> vector<2x128xf32>
    %173 = arith.addf %171, %172 : vector<2x128xf32>
    %174 = vector.extract_strided_slice %173 {offsets = [0, 0], sizes = [2, 32], strides = [1, 1]} : vector<2x128xf32> to vector<2x32xf32>
    %175 = arith.negf %174 : vector<2x32xf32>
    %176 = math.exp %175 : vector<2x32xf32>
    %cst_41 = arith.constant 1.000000e+00 : f32
    %177 = vector.broadcast %cst_41 : f32 to vector<2x32xf32>
    %178 = arith.addf %177, %176 : vector<2x32xf32>
    %179 = arith.divf %177, %178 : vector<2x32xf32>
    %180 = vector.extract_strided_slice %173 {offsets = [0, 32], sizes = [2, 32], strides = [1, 1]} : vector<2x128xf32> to vector<2x32xf32>
    %181 = arith.negf %180 : vector<2x32xf32>
    %182 = math.exp %181 : vector<2x32xf32>
    %cst_42 = arith.constant 1.000000e+00 : f32
    %183 = vector.broadcast %cst_42 : f32 to vector<2x32xf32>
    %184 = arith.addf %183, %182 : vector<2x32xf32>
    %185 = arith.divf %183, %184 : vector<2x32xf32>
    %186 = vector.extract_strided_slice %173 {offsets = [0, 64], sizes = [2, 32], strides = [1, 1]} : vector<2x128xf32> to vector<2x32xf32>
    %187 = math.tanh %186 : vector<2x32xf32>
    %188 = vector.extract_strided_slice %173 {offsets = [0, 96], sizes = [2, 32], strides = [1, 1]} : vector<2x128xf32> to vector<2x32xf32>
    %189 = arith.negf %188 : vector<2x32xf32>
    %190 = math.exp %189 : vector<2x32xf32>
    %cst_43 = arith.constant 1.000000e+00 : f32
    %191 = vector.broadcast %cst_43 : f32 to vector<2x32xf32>
    %192 = arith.addf %191, %190 : vector<2x32xf32>
    %193 = arith.divf %191, %192 : vector<2x32xf32>
    %194 = arith.mulf %185, %164 : vector<2x32xf32>
    %195 = arith.mulf %179, %187 : vector<2x32xf32>
    %196 = arith.addf %194, %195 : vector<2x32xf32>
    %197 = math.tanh %196 : vector<2x32xf32>
    %198 = arith.mulf %193, %197 : vector<2x32xf32>
    %c0_44 = arith.constant 0 : index
    %c5 = arith.constant 5 : index
    %c0_45 = arith.constant 0 : index
    %199 = vector.load %arg7[%c0_44, %c5, %c0_45] : memref<2x8x32xf32, #tpu.memory_space<vmem>>, vector<2x1x32xf32>
    %200 = vector.shape_cast %199 : vector<2x1x32xf32> to vector<2x32xf32>
    %201 = vector.shape_cast %198 : vector<2x32xf32> to vector<2x1x32xf32>
    tpu.vector_store %arg7[%c0_44, %c5, %c0_45], %201 {strides = array<i32>} : memref<2x8x32xf32, #tpu.memory_space<vmem>>, vector<2x1x32xf32>,
    %202 = vector.extract_strided_slice %6 {offsets = [0, 6, 0], sizes = [2, 1, 128], strides = [1, 1, 1]} : vector<2x8x128xf32> to vector<2x1x128xf32>
    %203 = vector.shape_cast %202 : vector<2x1x128xf32> to vector<2x128xf32>
    %cst_46 = arith.constant dense<0.000000e+00> : vector<2x128xf32>
    %204 = tpu.matmul %198, %7, %cst_46 {dimension_numbers = #tpu.dot_dimension_numbers<[1], [0], [0], [1], [0, 0, 1, 1], [], []>} : vector<2x32xf32>, vector<32x128xf32>, vector<2x128xf32> -> vector<2x128xf32>
    %205 = arith.addf %203, %204 : vector<2x128xf32>
    %206 = vector.extract_strided_slice %205 {offsets = [0, 0], sizes = [2, 32], strides = [1, 1]} : vector<2x128xf32> to vector<2x32xf32>
    %207 = arith.negf %206 : vector<2x32xf32>
    %208 = math.exp %207 : vector<2x32xf32>
    %cst_47 = arith.constant 1.000000e+00 : f32
    %209 = vector.broadcast %cst_47 : f32 to vector<2x32xf32>
    %210 = arith.addf %209, %208 : vector<2x32xf32>
    %211 = arith.divf %209, %210 : vector<2x32xf32>
    %212 = vector.extract_strided_slice %205 {offsets = [0, 32], sizes = [2, 32], strides = [1, 1]} : vector<2x128xf32> to vector<2x32xf32>
    %213 = arith.negf %212 : vector<2x32xf32>
    %214 = math.exp %213 : vector<2x32xf32>
    %cst_48 = arith.constant 1.000000e+00 : f32
    %215 = vector.broadcast %cst_48 : f32 to vector<2x32xf32>
    %216 = arith.addf %215, %214 : vector<2x32xf32>
    %217 = arith.divf %215, %216 : vector<2x32xf32>
    %218 = vector.extract_strided_slice %205 {offsets = [0, 64], sizes = [2, 32], strides = [1, 1]} : vector<2x128xf32> to vector<2x32xf32>
    %219 = math.tanh %218 : vector<2x32xf32>
    %220 = vector.extract_strided_slice %205 {offsets = [0, 96], sizes = [2, 32], strides = [1, 1]} : vector<2x128xf32> to vector<2x32xf32>
    %221 = arith.negf %220 : vector<2x32xf32>
    %222 = math.exp %221 : vector<2x32xf32>
    %cst_49 = arith.constant 1.000000e+00 : f32
    %223 = vector.broadcast %cst_49 : f32 to vector<2x32xf32>
    %224 = arith.addf %223, %222 : vector<2x32xf32>
    %225 = arith.divf %223, %224 : vector<2x32xf32>
    %226 = arith.mulf %217, %196 : vector<2x32xf32>
    %227 = arith.mulf %211, %219 : vector<2x32xf32>
    %228 = arith.addf %226, %227 : vector<2x32xf32>
    %229 = math.tanh %228 : vector<2x32xf32>
    %230 = arith.mulf %225, %229 : vector<2x32xf32>
    %c0_50 = arith.constant 0 : index
    %c6 = arith.constant 6 : index
    %c0_51 = arith.constant 0 : index
    %231 = vector.load %arg7[%c0_50, %c6, %c0_51] : memref<2x8x32xf32, #tpu.memory_space<vmem>>, vector<2x1x32xf32>
    %232 = vector.shape_cast %231 : vector<2x1x32xf32> to vector<2x32xf32>
    %233 = vector.shape_cast %230 : vector<2x32xf32> to vector<2x1x32xf32>
    tpu.vector_store %arg7[%c0_50, %c6, %c0_51], %233 {strides = array<i32>} : memref<2x8x32xf32, #tpu.memory_space<vmem>>, vector<2x1x32xf32>,
    %234 = vector.extract_strided_slice %6 {offsets = [0, 7, 0], sizes = [2, 1, 128], strides = [1, 1, 1]} : vector<2x8x128xf32> to vector<2x1x128xf32>
    %235 = vector.shape_cast %234 : vector<2x1x128xf32> to vector<2x128xf32>
    %cst_52 = arith.constant dense<0.000000e+00> : vector<2x128xf32>
    %236 = tpu.matmul %230, %7, %cst_52 {dimension_numbers = #tpu.dot_dimension_numbers<[1], [0], [0], [1], [0, 0, 1, 1], [], []>} : vector<2x32xf32>, vector<32x128xf32>, vector<2x128xf32> -> vector<2x128xf32>
    %237 = arith.addf %235, %236 : vector<2x128xf32>
    %238 = vector.extract_strided_slice %237 {offsets = [0, 0], sizes = [2, 32], strides = [1, 1]} : vector<2x128xf32> to vector<2x32xf32>
    %239 = arith.negf %238 : vector<2x32xf32>
    %240 = math.exp %239 : vector<2x32xf32>
    %cst_53 = arith.constant 1.000000e+00 : f32
    %241 = vector.broadcast %cst_53 : f32 to vector<2x32xf32>
    %242 = arith.addf %241, %240 : vector<2x32xf32>
    %243 = arith.divf %241, %242 : vector<2x32xf32>
    %244 = vector.extract_strided_slice %237 {offsets = [0, 32], sizes = [2, 32], strides = [1, 1]} : vector<2x128xf32> to vector<2x32xf32>
    %245 = arith.negf %244 : vector<2x32xf32>
    %246 = math.exp %245 : vector<2x32xf32>
    %cst_54 = arith.constant 1.000000e+00 : f32
    %247 = vector.broadcast %cst_54 : f32 to vector<2x32xf32>
    %248 = arith.addf %247, %246 : vector<2x32xf32>
    %249 = arith.divf %247, %248 : vector<2x32xf32>
    %250 = vector.extract_strided_slice %237 {offsets = [0, 64], sizes = [2, 32], strides = [1, 1]} : vector<2x128xf32> to vector<2x32xf32>
    %251 = math.tanh %250 : vector<2x32xf32>
    %252 = vector.extract_strided_slice %237 {offsets = [0, 96], sizes = [2, 32], strides = [1, 1]} : vector<2x128xf32> to vector<2x32xf32>
    %253 = arith.negf %252 : vector<2x32xf32>
    %254 = math.exp %253 : vector<2x32xf32>
    %cst_55 = arith.constant 1.000000e+00 : f32
    %255 = vector.broadcast %cst_55 : f32 to vector<2x32xf32>
    %256 = arith.addf %255, %254 : vector<2x32xf32>
    %257 = arith.divf %255, %256 : vector<2x32xf32>
    %258 = arith.mulf %249, %228 : vector<2x32xf32>
    %259 = arith.mulf %243, %251 : vector<2x32xf32>
    %260 = arith.addf %258, %259 : vector<2x32xf32>
    %261 = math.tanh %260 : vector<2x32xf32>
    %262 = arith.mulf %257, %261 : vector<2x32xf32>
    %c0_56 = arith.constant 0 : index
    %c7 = arith.constant 7 : index
    %c0_57 = arith.constant 0 : index
    %263 = vector.load %arg7[%c0_56, %c7, %c0_57] : memref<2x8x32xf32, #tpu.memory_space<vmem>>, vector<2x1x32xf32>
    %264 = vector.shape_cast %263 : vector<2x1x32xf32> to vector<2x32xf32>
    %265 = vector.shape_cast %262 : vector<2x32xf32> to vector<2x1x32xf32>
    tpu.vector_store %arg7[%c0_56, %c7, %c0_57], %265 {strides = array<i32>} : memref<2x8x32xf32, #tpu.memory_space<vmem>>, vector<2x1x32xf32>,
    %c0_58 = arith.constant 0 : index
    %c0_59 = arith.constant 0 : index
    %c0_60 = arith.constant 0 : index
    %266 = vector.load %arg7[%c0_58, %c0_59, %c0_60] : memref<2x8x32xf32, #tpu.memory_space<vmem>>, vector<2x8x32xf32>
    %267 = vector.shape_cast %262 : vector<2x32xf32> to vector<2x1x32xf32>
    "tpu.trace_start"() <{level = 10 : i32, message = "bqh,bsh->bqs"}> : () -> ()
    %cst_61 = arith.constant dense<0.000000e+00> : vector<2x1x8xf32>
    %268 = tpu.matmul %267, %266, %cst_61 {dimension_numbers = #tpu.dot_dimension_numbers<[2], [2], [1], [1], [0, 0, 0, 1, 1, 1], [0], [0]>} : vector<2x1x32xf32>, vector<2x8x32xf32>, vector<2x1x8xf32> -> vector<2x1x8xf32>
    "tpu.trace_stop"() : () -> ()
    %cst_62 = arith.constant dense<0xFF800000> : vector<2x1xf32>
    %269 = vector.multi_reduction <maximumf>, %268, %cst_62 [2] : vector<2x1x8xf32> to vector<2x1xf32>
    %270 = vector.shape_cast %269 : vector<2x1xf32> to vector<2x1x1xf32>
    %271 = vector.broadcast %270 : vector<2x1x1xf32> to vector<2x1x8xf32>
    %272 = arith.subf %268, %271 : vector<2x1x8xf32>
    %273 = math.exp %272 : vector<2x1x8xf32>
    %cst_63 = arith.constant dense<0.000000e+00> : vector<2x1xf32>
    %274 = vector.multi_reduction <add>, %273, %cst_63 [2] : vector<2x1x8xf32> to vector<2x1xf32>
    %275 = vector.shape_cast %274 : vector<2x1xf32> to vector<2x1x1xf32>
    %276 = vector.broadcast %275 : vector<2x1x1xf32> to vector<2x1x8xf32>
    %277 = arith.divf %273, %276 : vector<2x1x8xf32>
    "tpu.trace_start"() <{level = 10 : i32, message = "bqs,bsh->bqh"}> : () -> ()
    %cst_64 = arith.constant dense<0.000000e+00> : vector<2x1x32xf32>
    %278 = tpu.matmul %277, %266, %cst_64 {dimension_numbers = #tpu.dot_dimension_numbers<[2], [1], [1], [2], [0, 0, 0, 1, 1, 2], [0], [0]>} : vector<2x1x8xf32>, vector<2x8x32xf32>, vector<2x1x32xf32> -> vector<2x1x32xf32>
    "tpu.trace_stop"() : () -> ()
    %279 = vector.shape_cast %278 : vector<2x1x32xf32> to vector<2x32xf32>
    %c0_65 = arith.constant 0 : index
    %c0_66 = arith.constant 0 : index
    %280 = vector.load %arg4[%c0_65, %c0_66] : memref<32x128xf32, #tpu.memory_space<vmem>>, vector<32x128xf32>
    %cst_67 = arith.constant dense<0.000000e+00> : vector<2x128xf32>
    %281 = tpu.matmul %279, %280, %cst_67 {dimension_numbers = #tpu.dot_dimension_numbers<[1], [0], [0], [1], [0, 0, 1, 1], [], []>} : vector<2x32xf32>, vector<32x128xf32>, vector<2x128xf32> -> vector<2x128xf32>
    %c0_68 = arith.constant 0 : index
    %c0_69 = arith.constant 0 : index
    %282 = vector.load %arg5[%c0_68, %c0_69] : memref<1x128xf32, #tpu.memory_space<vmem>>, vector<1x128xf32>
    %283 = vector.broadcast %282 : vector<1x128xf32> to vector<2x128xf32>
    %284 = arith.addf %281, %283 : vector<2x128xf32>
    %c0_70 = arith.constant 0 : index
    %c0_71 = arith.constant 0 : index
    %285 = vector.load %arg6[%c0_70, %c0_71] : memref<2x128xf32, #tpu.memory_space<vmem>>, vector<2x128xf32>
    tpu.vector_store %arg6[%c0_70, %c0_71], %284 {strides = array<i32>} : memref<2x128xf32, #tpu.memory_space<vmem>>, vector<2x128xf32>,
    return
  }
}

</mosaic_0001>

<llo_original>
// kernel: attention_model_forward.1
$region0: #{attention_model_forward.1}
  #allocation0 [shape = 'u32[]', space=smem, size = 0x4, offset = 0x4, fixed_abs, tag = 'smem constant byte address 0x4 - core index']
  #allocation1 [shape = 'u32[144,128]{1,0:T(1,128)}', space=vmem, size = 0x12000, scoped, tag = 'internal scratch']
  #allocation2 [shape = 'f32[2,8,32]{2,1,0:T(8,128)}', space=vmem, size = 0x2000, scoped, tag = 'scratch operand']
  %s0 = inlined_call_operand.vmem [shape: f32[16,32], index: 0, kind: input, shape index: {}]
  %s1 = inlined_call_operand.vmem [shape: f32[32,128], index: 1, kind: input, shape index: {}]
  %s2 = inlined_call_operand.vmem [shape: f32[32,128], index: 2, kind: input, shape index: {}]
  %s3 = inlined_call_operand.vmem [shape: f32[1,128], index: 3, kind: input, shape index: {}]
  %s4 = inlined_call_operand.vmem [shape: f32[32,128], index: 4, kind: input, shape index: {}]
  %s5 = inlined_call_operand.vmem [shape: f32[1,128], index: 5, kind: input, shape index: {}]
  %s6 = inlined_call_operand.hbm [shape: f32[2,128], index: 6, kind: output, shape index: {}]
  %s7 = sld [smem:[#allocation0]]
  $region34: #{attention_model_forward.1} parent=0
    _
  %s9 = ssub.s32 1, %s7
  %s10 = scalar_select 0, %s9, %s7
  $region1: #{attention_model_forward.1} parent=0
    #allocation3 [shape = 'u8[1024]{0}', space=vmem, size = 0x400, scoped, tag = 'output window, operand 0, single buffered']
    #allocation4 [shape = 's32[1]{0}', space=sflag, size = 0x4, scoped, tag = 'scoped memory for attention_model_forward.1']
    %11 = vsyncpa [#allocation4], 0
    // Predicated region
    $region2: #{attention_model_forward.1} parent=1 // pred_check
      _
    $region3: #{attention_model_forward.1} parent=1 // pred_check_branch
      %13 = sbr.rel (0) target = $region5
    $region4: #{attention_model_forward.1} parent=1 // pred_region
      _
    $region5: #{attention_model_forward.1} parent=1 // pred_fallthru
      _
    // Predicated region
    $region6: #{attention_model_forward.1} parent=1 // pred_check
      _
    $region7: #{attention_model_forward.1} parent=1 // pred_check_branch
      %15 = sbr.rel (0) target = $region9
    $region8: #{attention_model_forward.1} parent=1 // pred_region
      _
    $region9: #{attention_model_forward.1} parent=1 // pred_fallthru
      _
    // Predicated region
    $region10: #{attention_model_forward.1} parent=1 // pred_check
      _
    $region11: #{attention_model_forward.1} parent=1 // pred_check_branch
      %17 = sbr.rel (0) target = $region13
    $region12: #{attention_model_forward.1} parent=1 // pred_region
      _
    $region13: #{attention_model_forward.1} parent=1 // pred_fallthru
      _
    // Predicated region
    $region14: #{attention_model_forward.1} parent=1 // pred_check
      _
    $region15: #{attention_model_forward.1} parent=1 // pred_check_branch
      %19 = sbr.rel (0) target = $region17
    $region16: #{attention_model_forward.1} parent=1 // pred_region
      _
    $region17: #{attention_model_forward.1} parent=1 // pred_fallthru
      _
    // Predicated region
    $region18: #{attention_model_forward.1} parent=1 // pred_check
      _
    $region19: #{attention_model_forward.1} parent=1 // pred_check_branch
      %21 = sbr.rel (0) target = $region21
    $region20: #{attention_model_forward.1} parent=1 // pred_region
      _
    $region21: #{attention_model_forward.1} parent=1 // pred_fallthru
      _
    // Predicated region
    $region22: #{attention_model_forward.1} parent=1 // pred_check
      _
    $region23: #{attention_model_forward.1} parent=1 // pred_check_branch
      %23 = sbr.rel (0) target = $region25
    $region24: #{attention_model_forward.1} parent=1 // pred_region
      _
    $region25: #{attention_model_forward.1} parent=1 // pred_fallthru
      _
    %v24 = vld [vmem:[%s0] sm:$0xff]
    %v25 = vld [vmem:[%s0 + $0x8] sm:$0xff]
    %v26 = vld [vmem:[%s1] sm:$0xff]
    %v27 = vld [vmem:[%s1 + $0x8] sm:$0xff]
    %v28 = vld [vmem:[%s1 + $0x10] sm:$0xff]
    %v29 = vld [vmem:[%s1 + $0x18] sm:$0xff]
    %v30 = vld [vmem:[%s3] sm:$0x1]
    %v32 = vlaneseq
    %v33 = vshrl.u32 %v32, 7
    %v34 = vsub.s32 0, %v33
    %v35 = vrot.slane %v30, %v34
    %vm37 = vcmask 261120
    %v39 = vsel %vm37, %v24, 0
    %v42 = vsel %vm37, %v25, 0
    %44 = vmatprep.subr.mxu0 0.0
    %45 = vmatpush1.msra.mxu0 %v26
    %46 = vmatprep.subr.mxu0 0.0
    %47 = vmatpush1.msra.mxu0 %v27
    %48 = vmatprep.subr.mxu0 0.0
    %49 = vmatpush1.msra.mxu0 %v28
    %50 = vmatprep.subr.mxu0 0.0
    %51 = vmatpush1.msra.mxu0 %v29
    %52 = vmatprep.subr.mxu0 0.0
    %53 = vmatpush1.msra.mxu0 0.0
    %54 = vmatprep.subr.mxu0 0.0
    %55 = vmatpush1.msra.mxu0 0.0
    %56 = vmatprep.subr.mxu0 0.0
    %57 = vmatpush1.msra.mxu0 0.0
    %58 = vmatprep.subr.mxu0 0.0
    %59 = vmatpush1.msra.mxu0 0.0
    %60 = vmatprep.subr.mxu0 0.0
    %61 = vmatpush1.msra.mxu0 0.0
    %62 = vmatprep.subr.mxu0 0.0
    %63 = vmatpush1.msra.mxu0 0.0
    %64 = vmatprep.subr.mxu0 0.0
    %65 = vmatpush1.msra.mxu0 0.0
    %66 = vmatprep.subr.mxu0 0.0
    %67 = vmatpush1.msra.mxu0 0.0
    %68 = vmatprep.subr.mxu0 0.0
    %69 = vmatpush1.msra.mxu0 0.0
    %70 = vmatprep.subr.mxu0 0.0
    %71 = vmatpush1.msra.mxu0 0.0
    %72 = vmatprep.subr.mxu0 0.0
    %73 = vmatpush1.msra.mxu0 0.0
    %74 = vmatprep.subr.mxu0 0.0
    %75 = vmatpush1.msra.mxu0 0.0
    %76 = vmatprep.subr.mxu0 0.0
    %77 = vmatpush1.msra.mxu0 0.0
    %78 = vmatprep.subr.mxu0 0.0
    %79 = vmatpush1.msra.mxu0 0.0
    %80 = vmatprep.subr.mxu0 0.0
    %81 = vmatpush1.msra.mxu0 0.0
    %82 = vmatprep.subr.mxu0 0.0
    %83 = vmatpush1.msra.mxu0 0.0
    %84 = vmatprep.subr.mxu0 0.0
    %85 = vmatpush1.msra.mxu0 0.0
    %86 = vmatprep.subr.mxu0 0.0
    %87 = vmatpush1.msra.mxu0 0.0
    %88 = vmatprep.subr.mxu0 0.0
    %89 = vmatpush1.msra.mxu0 0.0
    %90 = vmatprep.subr.mxu0 0.0
    %91 = vmatpush1.msra.mxu0 0.0
    %92 = vmatprep.subr.mxu0 0.0
    %93 = vmatpush1.msra.mxu0 0.0
    %94 = vmatprep.subr.mxu0 0.0
    %95 = vmatpush1.msra.mxu0 0.0
    %96 = vmatprep.subr.mxu0 0.0
    %97 = vmatpush1.msra.mxu0 0.0
    %98 = vmatprep.subr.mxu0 0.0
    %99 = vmatpush1.msra.mxu0 0.0
    %100 = vmatprep.subr.mxu0 0.0
    %101 = vmatpush1.msra.mxu0 0.0
    %102 = vmatprep.subr.mxu0 0.0
    %103 = vmatpush1.msra.mxu0 0.0
    %104 = vmatprep.subr.mxu0 0.0
    %105 = vmatpush1.msra.mxu0 0.0
    %106 = vmatprep.subr.mxu0 0.0
    %107 = vmatpush1.msra.mxu0 0.0
    %108 = vmatprep.mubr.f32.mxu0 0.0
    %109 = vmatmul.mubr.f32.gmra.mrb[0].mxu0 %v39
    %v110 = vpop.f32.mrb[0].mxu0
    %v111 = vadd.f32 %v35, %v110
    %v112 = vpop.f32.mrb[0].mxu0
    %113 = vmatprep.mubr.f32.mxu0 0.0
    %114 = vmatmul.mubr.f32.gmra.mrb[0].mxu0 %v42
    %v115 = vpop.f32.mrb[0].mxu0
    %v116 = vadd.f32 %v35, %v115
    %v117 = vpop.f32.mrb[0].mxu0
    %118 = vdwg.mxu0
    %v119 = vld [vmem:[%s2] sm:$0xff]
    %v120 = vld [vmem:[%s2 + $0x8] sm:$0xff]
    %v121 = vld [vmem:[%s2 + $0x10] sm:$0xff]
    %v122 = vld [vmem:[%s2 + $0x18] sm:$0xff]
    %v124 = vsel %vm37, 0.0, 0
    %126 = vmatprep.subr.mxu0 0.0
    %127 = vmatpush1.msra.mxu0 %v119
    %128 = vmatprep.subr.mxu0 0.0
    %129 = vmatpush1.msra.mxu0 %v120
    %130 = vmatprep.subr.mxu0 0.0
    %131 = vmatpush1.msra.mxu0 %v121
    %132 = vmatprep.subr.mxu0 0.0
    %133 = vmatpush1.msra.mxu0 %v122
    %134 = vmatprep.subr.mxu0 0.0
    %135 = vmatpush1.msra.mxu0 0.0
    %136 = vmatprep.subr.mxu0 0.0
    %137 = vmatpush1.msra.mxu0 0.0
    %138 = vmatprep.subr.mxu0 0.0
    %139 = vmatpush1.msra.mxu0 0.0
    %140 = vmatprep.subr.mxu0 0.0
    %141 = vmatpush1.msra.mxu0 0.0
    %142 = vmatprep.subr.mxu0 0.0
    %143 = vmatpush1.msra.mxu0 0.0
    %144 = vmatprep.subr.mxu0 0.0
    %145 = vmatpush1.msra.mxu0 0.0
    %146 = vmatprep.subr.mxu0 0.0
    %147 = vmatpush1.msra.mxu0 0.0
    %148 = vmatprep.subr.mxu0 0.0
    %149 = vmatpush1.msra.mxu0 0.0
    %150 = vmatprep.subr.mxu0 0.0
    %151 = vmatpush1.msra.mxu0 0.0
    %152 = vmatprep.subr.mxu0 0.0
    %153 = vmatpush1.msra.mxu0 0.0
    %154 = vmatprep.subr.mxu0 0.0
    %155 = vmatpush1.msra.mxu0 0.0
    %156 = vmatprep.subr.mxu0 0.0
    %157 = vmatpush1.msra.mxu0 0.0
    %158 = vmatprep.subr.mxu0 0.0
    %159 = vmatpush1.msra.mxu0 0.0
    %160 = vmatprep.subr.mxu0 0.0
    %161 = vmatpush1.msra.mxu0 0.0
    %162 = vmatprep.subr.mxu0 0.0
    %163 = vmatpush1.msra.mxu0 0.0
    %164 = vmatprep.subr.mxu0 0.0
    %165 = vmatpush1.msra.mxu0 0.0
    %166 = vmatprep.subr.mxu0 0.0
    %167 = vmatpush1.msra.mxu0 0.0
    %168 = vmatprep.subr.mxu0 0.0
    %169 = vmatpush1.msra.mxu0 0.0
    %170 = vmatprep.subr.mxu0 0.0
    %171 = vmatpush1.msra.mxu0 0.0
    %172 = vmatprep.subr.mxu0 0.0
    %173 = vmatpush1.msra.mxu0 0.0
    %174 = vmatprep.subr.mxu0 0.0
    %175 = vmatpush1.msra.mxu0 0.0
    %176 = vmatprep.subr.mxu0 0.0
    %177 = vmatpush1.msra.mxu0 0.0
    %178 = vmatprep.subr.mxu0 0.0
    %179 = vmatpush1.msra.mxu0 0.0
    %180 = vmatprep.subr.mxu0 0.0
    %181 = vmatpush1.msra.mxu0 0.0
    %182 = vmatprep.subr.mxu0 0.0
    %183 = vmatpush1.msra.mxu0 0.0
    %184 = vmatprep.subr.mxu0 0.0
    %185 = vmatpush1.msra.mxu0 0.0
    %186 = vmatprep.subr.mxu0 0.0
    %187 = vmatpush1.msra.mxu0 0.0
    %188 = vmatprep.subr.mxu0 0.0
    %189 = vmatpush1.msra.mxu0 0.0
    %190 = vmatprep.mubr.f32.mxu0 0.0
    %191 = vmatmul.mubr.f32.gmra.mrb[0].mxu0 %v124
    %v192 = vpop.f32.mrb[0].mxu0
    %v193 = vadd.f32 0.0, %v192
    %v194 = vpop.f32.mrb[0].mxu0
    %195 = vdwg.mxu0
    %v197 = vrot.slane %v193, 1
    %v200 = vadd.f32 %v111, %v193
    %v201 = vadd.f32 %v116, %v197
    %v202 = vxor.u32 %v200, 2147483648
    %v203 = vxor.u32 %v201, 2147483648
    %v204 = vmul.f32 %v202, 1.442695
    %v205 = vpow.pop %v204
    %v206 = vmul.f32 %v203, 1.442695
    %v207 = vpow.pop %v206
    %v208 = vadd.f32 %v205, 1.0
    %v209 = vadd.f32 %v207, 1.0
    %v210 = vrcp.pop %v208
    %v211 = vmul.f32 1.0, %v210
    %v212 = vrcp.pop %v209
    %v213 = vmul.f32 1.0, %v212
    %v214 = vtanh.pop %v200
    %v215 = vtanh.pop %v201
    %v216 = vmul.f32 %v211, 0.0
    %v217 = vmul.f32 %v213, 0.0
    %220 = vrot.lane.b32.xlu0 %v214, 64
    %v221 = vpop.permute.xlu0 %220
    %222 = vrot.lane.b32.xlu0 %v215, 64
    %v223 = vpop.permute.xlu0 %222
    %v226 = vmul.f32 %v211, %v221
    %v227 = vmul.f32 %v213, %v223
    %230 = vrot.lane.b32.xlu0 %v226, 32
    %v231 = vpop.permute.xlu0 %230
    %232 = vrot.lane.b32.xlu0 %v227, 32
    %v233 = vpop.permute.xlu0 %232
    %v236 = vadd.f32 %v216, %v231
    %v237 = vadd.f32 %v217, %v233
    %v238 = vtanh.pop %v236
    %v239 = vtanh.pop %v237
    %242 = vrot.lane.b32.xlu0 %v238, 64
    %v243 = vpop.permute.xlu0 %242
    %244 = vrot.lane.b32.xlu0 %v239, 64
    %v245 = vpop.permute.xlu0 %244
    %v248 = vmul.f32 %v211, %v243
    %v249 = vmul.f32 %v213, %v245
    %252 = vrot.lane.b32.xlu0 %v248, 32
    %v253 = vpop.permute.xlu0 %252
    %254 = vrot.lane.b32.xlu0 %v249, 32
    %v255 = vpop.permute.xlu0 %254
    %vm258 = vcmask 253952
    %259 = vst.msk [vmem:[#allocation2] sm:$0x1] %vm258, %v253
    %260 = vst.msk [vmem:[#allocation2 + $0x8] sm:$0x1] %vm258, %v255
    %v261 = vrot.slane %v249, 7
    %vm262 = vcmask 1041409
    %v263 = vsel %vm262, %v261, %v248
    %264 = vrot.lane.b32.xlu0 %v263, 32
    %v265 = vpop.permute.xlu0 %264
    %v266 = vsel %vm37, %v265, 0
    %268 = vmatprep.subr.mxu0 0.0
    %269 = vmatpush1.msra.mxu0 %v119
    %270 = vmatprep.subr.mxu0 0.0
    %271 = vmatpush1.msra.mxu0 %v120
    %272 = vmatprep.subr.mxu0 0.0
    %273 = vmatpush1.msra.mxu0 %v121
    %274 = vmatprep.subr.mxu0 0.0
    %275 = vmatpush1.msra.mxu0 %v122
    %276 = vmatprep.subr.mxu0 0.0
    %277 = vmatpush1.msra.mxu0 0.0
    %278 = vmatprep.subr.mxu0 0.0
    %279 = vmatpush1.msra.mxu0 0.0
    %280 = vmatprep.subr.mxu0 0.0
    %281 = vmatpush1.msra.mxu0 0.0
    %282 = vmatprep.subr.mxu0 0.0
    %283 = vmatpush1.msra.mxu0 0.0
    %284 = vmatprep.subr.mxu0 0.0
    %285 = vmatpush1.msra.mxu0 0.0
    %286 = vmatprep.subr.mxu0 0.0
    %287 = vmatpush1.msra.mxu0 0.0
    %288 = vmatprep.subr.mxu0 0.0
    %289 = vmatpush1.msra.mxu0 0.0
    %290 = vmatprep.subr.mxu0 0.0
    %291 = vmatpush1.msra.mxu0 0.0
    %292 = vmatprep.subr.mxu0 0.0
    %293 = vmatpush1.msra.mxu0 0.0
    %294 = vmatprep.subr.mxu0 0.0
    %295 = vmatpush1.msra.mxu0 0.0
    %296 = vmatprep.subr.mxu0 0.0
    %297 = vmatpush1.msra.mxu0 0.0
    %298 = vmatprep.subr.mxu0 0.0
    %299 = vmatpush1.msra.mxu0 0.0
    %300 = vmatprep.subr.mxu0 0.0
    %301 = vmatpush1.msra.mxu0 0.0
    %302 = vmatprep.subr.mxu0 0.0
    %303 = vmatpush1.msra.mxu0 0.0
    %304 = vmatprep.subr.mxu0 0.0
    %305 = vmatpush1.msra.mxu0 0.0
    %306 = vmatprep.subr.mxu0 0.0
    %307 = vmatpush1.msra.mxu0 0.0
    %308 = vmatprep.subr.mxu0 0.0
    %309 = vmatpush1.msra.mxu0 0.0
    %310 = vmatprep.subr.mxu0 0.0
    %311 = vmatpush1.msra.mxu0 0.0
    %312 = vmatprep.subr.mxu0 0.0
    %313 = vmatpush1.msra.mxu0 0.0
    %314 = vmatprep.subr.mxu0 0.0
    %315 = vmatpush1.msra.mxu0 0.0
    %316 = vmatprep.subr.mxu0 0.0
    %317 = vmatpush1.msra.mxu0 0.0
    %318 = vmatprep.subr.mxu0 0.0
    %319 = vmatpush1.msra.mxu0 0.0
    %320 = vmatprep.subr.mxu0 0.0
    %321 = vmatpush1.msra.mxu0 0.0
    %322 = vmatprep.subr.mxu0 0.0
    %323 = vmatpush1.msra.mxu0 0.0
    %324 = vmatprep.subr.mxu0 0.0
    %325 = vmatpush1.msra.mxu0 0.0
    %326 = vmatprep.subr.mxu0 0.0
    %327 = vmatpush1.msra.mxu0 0.0
    %328 = vmatprep.subr.mxu0 0.0
    %329 = vmatpush1.msra.mxu0 0.0
    %330 = vmatprep.subr.mxu0 0.0
    %331 = vmatpush1.msra.mxu0 0.0
    %332 = vmatprep.mubr.f32.mxu0 0.0
    %333 = vmatmul.mubr.f32.gmra.mrb[0].mxu0 %v266
    %v334 = vpop.f32.mrb[0].mxu0
    %v335 = vadd.f32 0.0, %v334
    %v336 = vpop.f32.mrb[0].mxu0
    %337 = vdwg.mxu0
    %v339 = vrot.slane %v335, 7
    %v342 = vadd.f32 %v111, %v339
    %v343 = vadd.f32 %v116, %v335
    %v344 = vxor.u32 %v342, 2147483648
    %v345 = vxor.u32 %v343, 2147483648
    %v346 = vmul.f32 %v344, 1.442695
    %v347 = vpow.pop %v346
    %v348 = vmul.f32 %v345, 1.442695
    %v349 = vpow.pop %v348
    %v350 = vadd.f32 %v347, 1.0
    %v351 = vadd.f32 %v349, 1.0
    %v352 = vrcp.pop %v350
    %v353 = vmul.f32 1.0, %v352
    %v354 = vrcp.pop %v351
    %v355 = vmul.f32 1.0, %v354
    %v356 = vtanh.pop %v342
    %v357 = vtanh.pop %v343
    %v360 = vrot.slane %v236, 7
    %v361 = vrot.slane %v237, 7
    %v364 = vmul.f32 %v353, %v360
    %v365 = vmul.f32 %v355, %v361
    %368 = vrot.lane.b32.xlu0 %v356, 64
    %v369 = vpop.permute.xlu0 %368
    %370 = vrot.lane.b32.xlu0 %v357, 64
    %v371 = vpop.permute.xlu0 %370
    %v374 = vmul.f32 %v353, %v369
    %v375 = vmul.f32 %v355, %v371
    %378 = vrot.lane.b32.xlu0 %v374, 32
    %v379 = vpop.permute.xlu0 %378
    %380 = vrot.lane.b32.xlu0 %v375, 32
    %v381 = vpop.permute.xlu0 %380
    %v384 = vadd.f32 %v364, %v379
    %v385 = vadd.f32 %v365, %v381
    %v386 = vtanh.pop %v384
    %v387 = vtanh.pop %v385
    %390 = vrot.lane.b32.xlu0 %v386, 64
    %v391 = vpop.permute.xlu0 %390
    %392 = vrot.lane.b32.xlu0 %v387, 64
    %v393 = vpop.permute.xlu0 %392
    %v396 = vmul.f32 %v353, %v391
    %v397 = vmul.f32 %v355, %v393
    %400 = vrot.lane.b32.xlu0 %v396, 32
    %v401 = vpop.permute.xlu0 %400
    %402 = vrot.lane.b32.xlu0 %v397, 32
    %v403 = vpop.permute.xlu0 %402
    %vm406 = vcmask 254977
    %407 = vst.msk [vmem:[#allocation2] sm:$0x2] %vm406, %v401
    %408 = vst.msk [vmem:[#allocation2 + $0x8] sm:$0x2] %vm406, %v403
    %v409 = vrot.slane %v396, 1
    %v410 = vsel %vm262, %v397, %v409
    %411 = vrot.lane.b32.xlu0 %v410, 32
    %v412 = vpop.permute.xlu0 %411
    %v413 = vsel %vm37, %v412, 0
    %415 = vmatprep.subr.mxu0 0.0
    %416 = vmatpush1.msra.mxu0 %v119
    %417 = vmatprep.subr.mxu0 0.0
    %418 = vmatpush1.msra.mxu0 %v120
    %419 = vmatprep.subr.mxu0 0.0
    %420 = vmatpush1.msra.mxu0 %v121
    %421 = vmatprep.subr.mxu0 0.0
    %422 = vmatpush1.msra.mxu0 %v122
    %423 = vmatprep.subr.mxu0 0.0
    %424 = vmatpush1.msra.mxu0 0.0
    %425 = vmatprep.subr.mxu0 0.0
    %426 = vmatpush1.msra.mxu0 0.0
    %427 = vmatprep.subr.mxu0 0.0
    %428 = vmatpush1.msra.mxu0 0.0
    %429 = vmatprep.subr.mxu0 0.0
    %430 = vmatpush1.msra.mxu0 0.0
    %431 = vmatprep.subr.mxu0 0.0
    %432 = vmatpush1.msra.mxu0 0.0
    %433 = vmatprep.subr.mxu0 0.0
    %434 = vmatpush1.msra.mxu0 0.0
    %435 = vmatprep.subr.mxu0 0.0
    %436 = vmatpush1.msra.mxu0 0.0
    %437 = vmatprep.subr.mxu0 0.0
    %438 = vmatpush1.msra.mxu0 0.0
    %439 = vmatprep.subr.mxu0 0.0
    %440 = vmatpush1.msra.mxu0 0.0
    %441 = vmatprep.subr.mxu0 0.0
    %442 = vmatpush1.msra.mxu0 0.0
    %443 = vmatprep.subr.mxu0 0.0
    %444 = vmatpush1.msra.mxu0 0.0
    %445 = vmatprep.subr.mxu0 0.0
    %446 = vmatpush1.msra.mxu0 0.0
    %447 = vmatprep.subr.mxu0 0.0
    %448 = vmatpush1.msra.mxu0 0.0
    %449 = vmatprep.subr.mxu0 0.0
    %450 = vmatpush1.msra.mxu0 0.0
    %451 = vmatprep.subr.mxu0 0.0
    %452 = vmatpush1.msra.mxu0 0.0
    %453 = vmatprep.subr.mxu0 0.0
    %454 = vmatpush1.msra.mxu0 0.0
    %455 = vmatprep.subr.mxu0 0.0
    %456 = vmatpush1.msra.mxu0 0.0
    %457 = vmatprep.subr.mxu0 0.0
    %458 = vmatpush1.msra.mxu0 0.0
    %459 = vmatprep.subr.mxu0 0.0
    %460 = vmatpush1.msra.mxu0 0.0
    %461 = vmatprep.subr.mxu0 0.0
    %462 = vmatpush1.msra.mxu0 0.0
    %463 = vmatprep.subr.mxu0 0.0
    %464 = vmatpush1.msra.mxu0 0.0
    %465 = vmatprep.subr.mxu0 0.0
    %466 = vmatpush1.msra.mxu0 0.0
    %467 = vmatprep.subr.mxu0 0.0
    %468 = vmatpush1.msra.mxu0 0.0
    %469 = vmatprep.subr.mxu0 0.0
    %470 = vmatpush1.msra.mxu0 0.0
    %471 = vmatprep.subr.mxu0 0.0
    %472 = vmatpush1.msra.mxu0 0.0
    %473 = vmatprep.subr.mxu0 0.0
    %474 = vmatpush1.msra.mxu0 0.0
    %475 = vmatprep.subr.mxu0 0.0
    %476 = vmatpush1.msra.mxu0 0.0
    %477 = vmatprep.subr.mxu0 0.0
    %478 = vmatpush1.msra.mxu0 0.0
    %479 = vmatprep.mubr.f32.mxu0 0.0
    %480 = vmatmul.mubr.f32.gmra.mrb[0].mxu0 %v413
    %v481 = vpop.f32.mrb[0].mxu0
    %v482 = vadd.f32 0.0, %v481
    %v483 = vpop.f32.mrb[0].mxu0
    %484 = vdwg.mxu0
    %v486 = vrot.slane %v482, 6
    %v487 = vrot.slane %v482, 7
    %v490 = vadd.f32 %v111, %v486
    %v491 = vadd.f32 %v116, %v487
    %v492 = vxor.u32 %v490, 2147483648
    %v493 = vxor.u32 %v491, 2147483648
    %v494 = vmul.f32 %v492, 1.442695
    %v495 = vpow.pop %v494
    %v496 = vmul.f32 %v493, 1.442695
    %v497 = vpow.pop %v496
    %v498 = vadd.f32 %v495, 1.0
    %v499 = vadd.f32 %v497, 1.0
    %v500 = vrcp.pop %v498
    %v501 = vmul.f32 1.0, %v500
    %v502 = vrcp.pop %v499
    %v503 = vmul.f32 1.0, %v502
    %v504 = vtanh.pop %v490
    %v505 = vtanh.pop %v491
    %v508 = vrot.slane %v384, 7
    %v509 = vrot.slane %v385, 7
    %v512 = vmul.f32 %v501, %v508
    %v513 = vmul.f32 %v503, %v509
    %516 = vrot.lane.b32.xlu0 %v504, 64
    %v517 = vpop.permute.xlu0 %516
    %518 = vrot.lane.b32.xlu0 %v505, 64
    %v519 = vpop.permute.xlu0 %518
    %v522 = vmul.f32 %v501, %v517
    %v523 = vmul.f32 %v503, %v519
    %526 = vrot.lane.b32.xlu0 %v522, 32
    %v527 = vpop.permute.xlu0 %526
    %528 = vrot.lane.b32.xlu0 %v523, 32
    %v529 = vpop.permute.xlu0 %528
    %v532 = vadd.f32 %v512, %v527
    %v533 = vadd.f32 %v513, %v529
    %v534 = vtanh.pop %v532
    %v535 = vtanh.pop %v533
    %538 = vrot.lane.b32.xlu0 %v534, 64
    %v539 = vpop.permute.xlu0 %538
    %540 = vrot.lane.b32.xlu0 %v535, 64
    %v541 = vpop.permute.xlu0 %540
    %v544 = vmul.f32 %v501, %v539
    %v545 = vmul.f32 %v503, %v541
    %548 = vrot.lane.b32.xlu0 %v544, 32
    %v549 = vpop.permute.xlu0 %548
    %550 = vrot.lane.b32.xlu0 %v545, 32
    %v551 = vpop.permute.xlu0 %550
    %vm554 = vcmask 256002
    %555 = vst.msk [vmem:[#allocation2] sm:$0x4] %vm554, %v549
    %556 = vst.msk [vmem:[#allocation2 + $0x8] sm:$0x4] %vm554, %v551
    %v557 = vrot.slane %v544, 2
    %v558 = vrot.slane %v545, 1
    %v559 = vsel %vm262, %v558, %v557
    %560 = vrot.lane.b32.xlu0 %v559, 32
    %v561 = vpop.permute.xlu0 %560
    %v562 = vsel %vm37, %v561, 0
    %564 = vmatprep.subr.mxu0 0.0
    %565 = vmatpush1.msra.mxu0 %v119
    %566 = vmatprep.subr.mxu0 0.0
    %567 = vmatpush1.msra.mxu0 %v120
    %568 = vmatprep.subr.mxu0 0.0
    %569 = vmatpush1.msra.mxu0 %v121
    %570 = vmatprep.subr.mxu0 0.0
    %571 = vmatpush1.msra.mxu0 %v122
    %572 = vmatprep.subr.mxu0 0.0
    %573 = vmatpush1.msra.mxu0 0.0
    %574 = vmatprep.subr.mxu0 0.0
    %575 = vmatpush1.msra.mxu0 0.0
    %576 = vmatprep.subr.mxu0 0.0
    %577 = vmatpush1.msra.mxu0 0.0
    %578 = vmatprep.subr.mxu0 0.0
    %579 = vmatpush1.msra.mxu0 0.0
    %580 = vmatprep.subr.mxu0 0.0
    %581 = vmatpush1.msra.mxu0 0.0
    %582 = vmatprep.subr.mxu0 0.0
    %583 = vmatpush1.msra.mxu0 0.0
    %584 = vmatprep.subr.mxu0 0.0
    %585 = vmatpush1.msra.mxu0 0.0
    %586 = vmatprep.subr.mxu0 0.0
    %587 = vmatpush1.msra.mxu0 0.0
    %588 = vmatprep.subr.mxu0 0.0
    %589 = vmatpush1.msra.mxu0 0.0
    %590 = vmatprep.subr.mxu0 0.0
    %591 = vmatpush1.msra.mxu0 0.0
    %592 = vmatprep.subr.mxu0 0.0
    %593 = vmatpush1.msra.mxu0 0.0
    %594 = vmatprep.subr.mxu0 0.0
    %595 = vmatpush1.msra.mxu0 0.0
    %596 = vmatprep.subr.mxu0 0.0
    %597 = vmatpush1.msra.mxu0 0.0
    %598 = vmatprep.subr.mxu0 0.0
    %599 = vmatpush1.msra.mxu0 0.0
    %600 = vmatprep.subr.mxu0 0.0
    %601 = vmatpush1.msra.mxu0 0.0
    %602 = vmatprep.subr.mxu0 0.0
    %603 = vmatpush1.msra.mxu0 0.0
    %604 = vmatprep.subr.mxu0 0.0
    %605 = vmatpush1.msra.mxu0 0.0
    %606 = vmatprep.subr.mxu0 0.0
    %607 = vmatpush1.msra.mxu0 0.0
    %608 = vmatprep.subr.mxu0 0.0
    %609 = vmatpush1.msra.mxu0 0.0
    %610 = vmatprep.subr.mxu0 0.0
    %611 = vmatpush1.msra.mxu0 0.0
    %612 = vmatprep.subr.mxu0 0.0
    %613 = vmatpush1.msra.mxu0 0.0
    %614 = vmatprep.subr.mxu0 0.0
    %615 = vmatpush1.msra.mxu0 0.0
    %616 = vmatprep.subr.mxu0 0.0
    %617 = vmatpush1.msra.mxu0 0.0
    %618 = vmatprep.subr.mxu0 0.0
    %619 = vmatpush1.msra.mxu0 0.0
    %620 = vmatprep.subr.mxu0 0.0
    %621 = vmatpush1.msra.mxu0 0.0
    %622 = vmatprep.subr.mxu0 0.0
    %623 = vmatpush1.msra.mxu0 0.0
    %624 = vmatprep.subr.mxu0 0.0
    %625 = vmatpush1.msra.mxu0 0.0
    %626 = vmatprep.subr.mxu0 0.0
    %627 = vmatpush1.msra.mxu0 0.0
    %628 = vmatprep.mubr.f32.mxu0 0.0
    %629 = vmatmul.mubr.f32.gmra.mrb[0].mxu0 %v562
    %v630 = vpop.f32.mrb[0].mxu0
    %v631 = vadd.f32 0.0, %v630
    %v632 = vpop.f32.mrb[0].mxu0
    %633 = vdwg.mxu0
    %v635 = vrot.slane %v631, 5
    %v636 = vrot.slane %v631, 6
    %v639 = vadd.f32 %v111, %v635
    %v640 = vadd.f32 %v116, %v636
    %v641 = vxor.u32 %v639, 2147483648
    %v642 = vxor.u32 %v640, 2147483648
    %v643 = vmul.f32 %v641, 1.442695
    %v644 = vpow.pop %v643
    %v645 = vmul.f32 %v642, 1.442695
    %v646 = vpow.pop %v645
    %v647 = vadd.f32 %v644, 1.0
    %v648 = vadd.f32 %v646, 1.0
    %v649 = vrcp.pop %v647
    %v650 = vmul.f32 1.0, %v649
    %v651 = vrcp.pop %v648
    %v652 = vmul.f32 1.0, %v651
    %v653 = vtanh.pop %v639
    %v654 = vtanh.pop %v640
    %v657 = vrot.slane %v532, 7
    %v658 = vrot.slane %v533, 7
    %v661 = vmul.f32 %v650, %v657
    %v662 = vmul.f32 %v652, %v658
    %665 = vrot.lane.b32.xlu0 %v653, 64
    %v666 = vpop.permute.xlu0 %665
    %667 = vrot.lane.b32.xlu0 %v654, 64
    %v668 = vpop.permute.xlu0 %667
    %v671 = vmul.f32 %v650, %v666
    %v672 = vmul.f32 %v652, %v668
    %675 = vrot.lane.b32.xlu0 %v671, 32
    %v676 = vpop.permute.xlu0 %675
    %677 = vrot.lane.b32.xlu0 %v672, 32
    %v678 = vpop.permute.xlu0 %677
    %v681 = vadd.f32 %v661, %v676
    %v682 = vadd.f32 %v662, %v678
    %v683 = vtanh.pop %v681
    %v684 = vtanh.pop %v682
    %687 = vrot.lane.b32.xlu0 %v683, 64
    %v688 = vpop.permute.xlu0 %687
    %689 = vrot.lane.b32.xlu0 %v684, 64
    %v690 = vpop.permute.xlu0 %689
    %v693 = vmul.f32 %v650, %v688
    %v694 = vmul.f32 %v652, %v690
    %697 = vrot.lane.b32.xlu0 %v693, 32
    %v698 = vpop.permute.xlu0 %697
    %699 = vrot.lane.b32.xlu0 %v694, 32
    %v700 = vpop.permute.xlu0 %699
    %vm703 = vcmask 257027
    %704 = vst.msk [vmem:[#allocation2] sm:$0x8] %vm703, %v698
    %705 = vst.msk [vmem:[#allocation2 + $0x8] sm:$0x8] %vm703, %v700
    %v706 = vrot.slane %v693, 3
    %v707 = vrot.slane %v694, 2
    %v708 = vsel %vm262, %v707, %v706
    %709 = vrot.lane.b32.xlu0 %v708, 32
    %v710 = vpop.permute.xlu0 %709
    %v711 = vsel %vm37, %v710, 0
    %713 = vmatprep.subr.mxu0 0.0
    %714 = vmatpush1.msra.mxu0 %v119
    %715 = vmatprep.subr.mxu0 0.0
    %716 = vmatpush1.msra.mxu0 %v120
    %717 = vmatprep.subr.mxu0 0.0
    %718 = vmatpush1.msra.mxu0 %v121
    %719 = vmatprep.subr.mxu0 0.0
    %720 = vmatpush1.msra.mxu0 %v122
    %721 = vmatprep.subr.mxu0 0.0
    %722 = vmatpush1.msra.mxu0 0.0
    %723 = vmatprep.subr.mxu0 0.0
    %724 = vmatpush1.msra.mxu0 0.0
    %725 = vmatprep.subr.mxu0 0.0
    %726 = vmatpush1.msra.mxu0 0.0
    %727 = vmatprep.subr.mxu0 0.0
    %728 = vmatpush1.msra.mxu0 0.0
    %729 = vmatprep.subr.mxu0 0.0
    %730 = vmatpush1.msra.mxu0 0.0
    %731 = vmatprep.subr.mxu0 0.0
    %732 = vmatpush1.msra.mxu0 0.0
    %733 = vmatprep.subr.mxu0 0.0
    %734 = vmatpush1.msra.mxu0 0.0
    %735 = vmatprep.subr.mxu0 0.0
    %736 = vmatpush1.msra.mxu0 0.0
    %737 = vmatprep.subr.mxu0 0.0
    %738 = vmatpush1.msra.mxu0 0.0
    %739 = vmatprep.subr.mxu0 0.0
    %740 = vmatpush1.msra.mxu0 0.0
    %741 = vmatprep.subr.mxu0 0.0
    %742 = vmatpush1.msra.mxu0 0.0
    %743 = vmatprep.subr.mxu0 0.0
    %744 = vmatpush1.msra.mxu0 0.0
    %745 = vmatprep.subr.mxu0 0.0
    %746 = vmatpush1.msra.mxu0 0.0
    %747 = vmatprep.subr.mxu0 0.0
    %748 = vmatpush1.msra.mxu0 0.0
    %749 = vmatprep.subr.mxu0 0.0
    %750 = vmatpush1.msra.mxu0 0.0
    %751 = vmatprep.subr.mxu0 0.0
    %752 = vmatpush1.msra.mxu0 0.0
    %753 = vmatprep.subr.mxu0 0.0
    %754 = vmatpush1.msra.mxu0 0.0
    %755 = vmatprep.subr.mxu0 0.0
    %756 = vmatpush1.msra.mxu0 0.0
    %757 = vmatprep.subr.mxu0 0.0
    %758 = vmatpush1.msra.mxu0 0.0
    %759 = vmatprep.subr.mxu0 0.0
    %760 = vmatpush1.msra.mxu0 0.0
    %761 = vmatprep.subr.mxu0 0.0
    %762 = vmatpush1.msra.mxu0 0.0
    %763 = vmatprep.subr.mxu0 0.0
    %764 = vmatpush1.msra.mxu0 0.0
    %765 = vmatprep.subr.mxu0 0.0
    %766 = vmatpush1.msra.mxu0 0.0
    %767 = vmatprep.subr.mxu0 0.0
    %768 = vmatpush1.msra.mxu0 0.0
    %769 = vmatprep.subr.mxu0 0.0
    %770 = vmatpush1.msra.mxu0 0.0
    %771 = vmatprep.subr.mxu0 0.0
    %772 = vmatpush1.msra.mxu0 0.0
    %773 = vmatprep.subr.mxu0 0.0
    %774 = vmatpush1.msra.mxu0 0.0
    %775 = vmatprep.subr.mxu0 0.0
    %776 = vmatpush1.msra.mxu0 0.0
    %777 = vmatprep.mubr.f32.mxu0 0.0
    %778 = vmatmul.mubr.f32.gmra.mrb[0].mxu0 %v711
    %v779 = vpop.f32.mrb[0].mxu0
    %v780 = vadd.f32 0.0, %v779
    %v781 = vpop.f32.mrb[0].mxu0
    %782 = vdwg.mxu0
    %v784 = vrot.slane %v780, 4
    %v785 = vrot.slane %v780, 5
    %v788 = vadd.f32 %v111, %v784
    %v789 = vadd.f32 %v116, %v785
    %v790 = vxor.u32 %v788, 2147483648
    %v791 = vxor.u32 %v789, 2147483648
    %v792 = vmul.f32 %v790, 1.442695
    %v793 = vpow.pop %v792
    %v794 = vmul.f32 %v791, 1.442695
    %v795 = vpow.pop %v794
    %v796 = vadd.f32 %v793, 1.0
    %v797 = vadd.f32 %v795, 1.0
    %v798 = vrcp.pop %v796
    %v799 = vmul.f32 1.0, %v798
    %v800 = vrcp.pop %v797
    %v801 = vmul.f32 1.0, %v800
    %v802 = vtanh.pop %v788
    %v803 = vtanh.pop %v789
    %v806 = vrot.slane %v681, 7
    %v807 = vrot.slane %v682, 7
    %v810 = vmul.f32 %v799, %v806
    %v811 = vmul.f32 %v801, %v807
    %814 = vrot.lane.b32.xlu0 %v802, 64
    %v815 = vpop.permute.xlu0 %814
    %816 = vrot.lane.b32.xlu0 %v803, 64
    %v817 = vpop.permute.xlu0 %816
    %v820 = vmul.f32 %v799, %v815
    %v821 = vmul.f32 %v801, %v817
    %824 = vrot.lane.b32.xlu0 %v820, 32
    %v825 = vpop.permute.xlu0 %824
    %826 = vrot.lane.b32.xlu0 %v821, 32
    %v827 = vpop.permute.xlu0 %826
    %v830 = vadd.f32 %v810, %v825
    %v831 = vadd.f32 %v811, %v827
    %v832 = vtanh.pop %v830
    %v833 = vtanh.pop %v831
    %836 = vrot.lane.b32.xlu0 %v832, 64
    %v837 = vpop.permute.xlu0 %836
    %838 = vrot.lane.b32.xlu0 %v833, 64
    %v839 = vpop.permute.xlu0 %838
    %v842 = vmul.f32 %v799, %v837
    %v843 = vmul.f32 %v801, %v839
    %846 = vrot.lane.b32.xlu0 %v842, 32
    %v847 = vpop.permute.xlu0 %846
    %848 = vrot.lane.b32.xlu0 %v843, 32
    %v849 = vpop.permute.xlu0 %848
    %vm852 = vcmask 258052
    %853 = vst.msk [vmem:[#allocation2] sm:$0x10] %vm852, %v847
    %854 = vst.msk [vmem:[#allocation2 + $0x8] sm:$0x10] %vm852, %v849
    %v855 = vrot.slane %v842, 4
    %v856 = vrot.slane %v843, 3
    %v857 = vsel %vm262, %v856, %v855
    %858 = vrot.lane.b32.xlu0 %v857, 32
    %v859 = vpop.permute.xlu0 %858
    %v860 = vsel %vm37, %v859, 0
    %862 = vmatprep.subr.mxu0 0.0
    %863 = vmatpush1.msra.mxu0 %v119
    %864 = vmatprep.subr.mxu0 0.0
    %865 = vmatpush1.msra.mxu0 %v120
    %866 = vmatprep.subr.mxu0 0.0
    %867 = vmatpush1.msra.mxu0 %v121
    %868 = vmatprep.subr.mxu0 0.0
    %869 = vmatpush1.msra.mxu0 %v122
    %870 = vmatprep.subr.mxu0 0.0
    %871 = vmatpush1.msra.mxu0 0.0
    %872 = vmatprep.subr.mxu0 0.0
    %873 = vmatpush1.msra.mxu0 0.0
    %874 = vmatprep.subr.mxu0 0.0
    %875 = vmatpush1.msra.mxu0 0.0
    %876 = vmatprep.subr.mxu0 0.0
    %877 = vmatpush1.msra.mxu0 0.0
    %878 = vmatprep.subr.mxu0 0.0
    %879 = vmatpush1.msra.mxu0 0.0
    %880 = vmatprep.subr.mxu0 0.0
    %881 = vmatpush1.msra.mxu0 0.0
    %882 = vmatprep.subr.mxu0 0.0
    %883 = vmatpush1.msra.mxu0 0.0
    %884 = vmatprep.subr.mxu0 0.0
    %885 = vmatpush1.msra.mxu0 0.0
    %886 = vmatprep.subr.mxu0 0.0
    %887 = vmatpush1.msra.mxu0 0.0
    %888 = vmatprep.subr.mxu0 0.0
    %889 = vmatpush1.msra.mxu0 0.0
    %890 = vmatprep.subr.mxu0 0.0
    %891 = vmatpush1.msra.mxu0 0.0
    %892 = vmatprep.subr.mxu0 0.0
    %893 = vmatpush1.msra.mxu0 0.0
    %894 = vmatprep.subr.mxu0 0.0
    %895 = vmatpush1.msra.mxu0 0.0
    %896 = vmatprep.subr.mxu0 0.0
    %897 = vmatpush1.msra.mxu0 0.0
    %898 = vmatprep.subr.mxu0 0.0
    %899 = vmatpush1.msra.mxu0 0.0
    %900 = vmatprep.subr.mxu0 0.0
    %901 = vmatpush1.msra.mxu0 0.0
    %902 = vmatprep.subr.mxu0 0.0
    %903 = vmatpush1.msra.mxu0 0.0
    %904 = vmatprep.subr.mxu0 0.0
    %905 = vmatpush1.msra.mxu0 0.0
    %906 = vmatprep.subr.mxu0 0.0
    %907 = vmatpush1.msra.mxu0 0.0
    %908 = vmatprep.subr.mxu0 0.0
    %909 = vmatpush1.msra.mxu0 0.0
    %910 = vmatprep.subr.mxu0 0.0
    %911 = vmatpush1.msra.mxu0 0.0
    %912 = vmatprep.subr.mxu0 0.0
    %913 = vmatpush1.msra.mxu0 0.0
    %914 = vmatprep.subr.mxu0 0.0
    %915 = vmatpush1.msra.mxu0 0.0
    %916 = vmatprep.subr.mxu0 0.0
    %917 = vmatpush1.msra.mxu0 0.0
    %918 = vmatprep.subr.mxu0 0.0
    %919 = vmatpush1.msra.mxu0 0.0
    %920 = vmatprep.subr.mxu0 0.0
    %921 = vmatpush1.msra.mxu0 0.0
    %922 = vmatprep.subr.mxu0 0.0
    %923 = vmatpush1.msra.mxu0 0.0
    %924 = vmatprep.subr.mxu0 0.0
    %925 = vmatpush1.msra.mxu0 0.0
    %926 = vmatprep.mubr.f32.mxu0 0.0
    %927 = vmatmul.mubr.f32.gmra.mrb[0].mxu0 %v860
    %v928 = vpop.f32.mrb[0].mxu0
    %v929 = vadd.f32 0.0, %v928
    %v930 = vpop.f32.mrb[0].mxu0
    %931 = vdwg.mxu0
    %v933 = vrot.slane %v929, 3
    %v934 = vrot.slane %v929, 4
    %v937 = vadd.f32 %v111, %v933
    %v938 = vadd.f32 %v116, %v934
    %v939 = vxor.u32 %v937, 2147483648
    %v940 = vxor.u32 %v938, 2147483648
    %v941 = vmul.f32 %v939, 1.442695
    %v942 = vpow.pop %v941
    %v943 = vmul.f32 %v940, 1.442695
    %v944 = vpow.pop %v943
    %v945 = vadd.f32 %v942, 1.0
    %v946 = vadd.f32 %v944, 1.0
    %v947 = vrcp.pop %v945
    %v948 = vmul.f32 1.0, %v947
    %v949 = vrcp.pop %v946
    %v950 = vmul.f32 1.0, %v949
    %v951 = vtanh.pop %v937
    %v952 = vtanh.pop %v938
    %v955 = vrot.slane %v830, 7
    %v956 = vrot.slane %v831, 7
    %v959 = vmul.f32 %v948, %v955
    %v960 = vmul.f32 %v950, %v956
    %963 = vrot.lane.b32.xlu0 %v951, 64
    %v964 = vpop.permute.xlu0 %963
    %965 = vrot.lane.b32.xlu0 %v952, 64
    %v966 = vpop.permute.xlu0 %965
    %v969 = vmul.f32 %v948, %v964
    %v970 = vmul.f32 %v950, %v966
    %973 = vrot.lane.b32.xlu0 %v969, 32
    %v974 = vpop.permute.xlu0 %973
    %975 = vrot.lane.b32.xlu0 %v970, 32
    %v976 = vpop.permute.xlu0 %975
    %v979 = vadd.f32 %v959, %v974
    %v980 = vadd.f32 %v960, %v976
    %v981 = vtanh.pop %v979
    %v982 = vtanh.pop %v980
    %985 = vrot.lane.b32.xlu0 %v981, 64
    %v986 = vpop.permute.xlu0 %985
    %987 = vrot.lane.b32.xlu0 %v982, 64
    %v988 = vpop.permute.xlu0 %987
    %v991 = vmul.f32 %v948, %v986
    %v992 = vmul.f32 %v950, %v988
    %995 = vrot.lane.b32.xlu0 %v991, 32
    %v996 = vpop.permute.xlu0 %995
    %997 = vrot.lane.b32.xlu0 %v992, 32
    %v998 = vpop.permute.xlu0 %997
    %vm1001 = vcmask 259077
    %1002 = vst.msk [vmem:[#allocation2] sm:$0x20] %vm1001, %v996
    %1003 = vst.msk [vmem:[#allocation2 + $0x8] sm:$0x20] %vm1001, %v998
    %v1004 = vrot.slane %v991, 5
    %v1005 = vrot.slane %v992, 4
    %v1006 = vsel %vm262, %v1005, %v1004
    %1007 = vrot.lane.b32.xlu0 %v1006, 32
    %v1008 = vpop.permute.xlu0 %1007
    %v1009 = vsel %vm37, %v1008, 0
    %1011 = vmatprep.subr.mxu0 0.0
    %1012 = vmatpush1.msra.mxu0 %v119
    %1013 = vmatprep.subr.mxu0 0.0
    %1014 = vmatpush1.msra.mxu0 %v120
    %1015 = vmatprep.subr.mxu0 0.0
    %1016 = vmatpush1.msra.mxu0 %v121
    %1017 = vmatprep.subr.mxu0 0.0
    %1018 = vmatpush1.msra.mxu0 %v122
    %1019 = vmatprep.subr.mxu0 0.0
    %1020 = vmatpush1.msra.mxu0 0.0
    %1021 = vmatprep.subr.mxu0 0.0
    %1022 = vmatpush1.msra.mxu0 0.0
    %1023 = vmatprep.subr.mxu0 0.0
    %1024 = vmatpush1.msra.mxu0 0.0
    %1025 = vmatprep.subr.mxu0 0.0
    %1026 = vmatpush1.msra.mxu0 0.0
    %1027 = vmatprep.subr.mxu0 0.0
    %1028 = vmatpush1.msra.mxu0 0.0
    %1029 = vmatprep.subr.mxu0 0.0
    %1030 = vmatpush1.msra.mxu0 0.0
    %1031 = vmatprep.subr.mxu0 0.0
    %1032 = vmatpush1.msra.mxu0 0.0
    %1033 = vmatprep.subr.mxu0 0.0
    %1034 = vmatpush1.msra.mxu0 0.0
    %1035 = vmatprep.subr.mxu0 0.0
    %1036 = vmatpush1.msra.mxu0 0.0
    %1037 = vmatprep.subr.mxu0 0.0
    %1038 = vmatpush1.msra.mxu0 0.0
    %1039 = vmatprep.subr.mxu0 0.0
    %1040 = vmatpush1.msra.mxu0 0.0
    %1041 = vmatprep.subr.mxu0 0.0
    %1042 = vmatpush1.msra.mxu0 0.0
    %1043 = vmatprep.subr.mxu0 0.0
    %1044 = vmatpush1.msra.mxu0 0.0
    %1045 = vmatprep.subr.mxu0 0.0
    %1046 = vmatpush1.msra.mxu0 0.0
    %1047 = vmatprep.subr.mxu0 0.0
    %1048 = vmatpush1.msra.mxu0 0.0
    %1049 = vmatprep.subr.mxu0 0.0
    %1050 = vmatpush1.msra.mxu0 0.0
    %1051 = vmatprep.subr.mxu0 0.0
    %1052 = vmatpush1.msra.mxu0 0.0
    %1053 = vmatprep.subr.mxu0 0.0
    %1054 = vmatpush1.msra.mxu0 0.0
    %1055 = vmatprep.subr.mxu0 0.0
    %1056 = vmatpush1.msra.mxu0 0.0
    %1057 = vmatprep.subr.mxu0 0.0
    %1058 = vmatpush1.msra.mxu0 0.0
    %1059 = vmatprep.subr.mxu0 0.0
    %1060 = vmatpush1.msra.mxu0 0.0
    %1061 = vmatprep.subr.mxu0 0.0
    %1062 = vmatpush1.msra.mxu0 0.0
    %1063 = vmatprep.subr.mxu0 0.0
    %1064 = vmatpush1.msra.mxu0 0.0
    %1065 = vmatprep.subr.mxu0 0.0
    %1066 = vmatpush1.msra.mxu0 0.0
    %1067 = vmatprep.subr.mxu0 0.0
    %1068 = vmatpush1.msra.mxu0 0.0
    %1069 = vmatprep.subr.mxu0 0.0
    %1070 = vmatpush1.msra.mxu0 0.0
    %1071 = vmatprep.subr.mxu0 0.0
    %1072 = vmatpush1.msra.mxu0 0.0
    %1073 = vmatprep.subr.mxu0 0.0
    %1074 = vmatpush1.msra.mxu0 0.0
    %1075 = vmatprep.mubr.f32.mxu0 0.0
    %1076 = vmatmul.mubr.f32.gmra.mrb[0].mxu0 %v1009
    %v1077 = vpop.f32.mrb[0].mxu0
    %v1078 = vadd.f32 0.0, %v1077
    %v1079 = vpop.f32.mrb[0].mxu0
    %1080 = vdwg.mxu0
    %v1082 = vrot.slane %v1078, 2
    %v1083 = vrot.slane %v1078, 3
    %v1086 = vadd.f32 %v111, %v1082
    %v1087 = vadd.f32 %v116, %v1083
    %v1088 = vxor.u32 %v1086, 2147483648
    %v1089 = vxor.u32 %v1087, 2147483648
    %v1090 = vmul.f32 %v1088, 1.442695
    %v1091 = vpow.pop %v1090
    %v1092 = vmul.f32 %v1089, 1.442695
    %v1093 = vpow.pop %v1092
    %v1094 = vadd.f32 %v1091, 1.0
    %v1095 = vadd.f32 %v1093, 1.0
    %v1096 = vrcp.pop %v1094
    %v1097 = vmul.f32 1.0, %v1096
    %v1098 = vrcp.pop %v1095
    %v1099 = vmul.f32 1.0, %v1098
    %v1100 = vtanh.pop %v1086
    %v1101 = vtanh.pop %v1087
    %v1104 = vrot.slane %v979, 7
    %v1105 = vrot.slane %v980, 7
    %v1108 = vmul.f32 %v1097, %v1104
    %v1109 = vmul.f32 %v1099, %v1105
    %1112 = vrot.lane.b32.xlu0 %v1100, 64
    %v1113 = vpop.permute.xlu0 %1112
    %1114 = vrot.lane.b32.xlu0 %v1101, 64
    %v1115 = vpop.permute.xlu0 %1114
    %v1118 = vmul.f32 %v1097, %v1113
    %v1119 = vmul.f32 %v1099, %v1115
    %1122 = vrot.lane.b32.xlu0 %v1118, 32
    %v1123 = vpop.permute.xlu0 %1122
    %1124 = vrot.lane.b32.xlu0 %v1119, 32
    %v1125 = vpop.permute.xlu0 %1124
    %v1128 = vadd.f32 %v1108, %v1123
    %v1129 = vadd.f32 %v1109, %v1125
    %v1130 = vtanh.pop %v1128
    %v1131 = vtanh.pop %v1129
    %1134 = vrot.lane.b32.xlu0 %v1130, 64
    %v1135 = vpop.permute.xlu0 %1134
    %1136 = vrot.lane.b32.xlu0 %v1131, 64
    %v1137 = vpop.permute.xlu0 %1136
    %v1140 = vmul.f32 %v1097, %v1135
    %v1141 = vmul.f32 %v1099, %v1137
    %1144 = vrot.lane.b32.xlu0 %v1140, 32
    %v1145 = vpop.permute.xlu0 %1144
    %1146 = vrot.lane.b32.xlu0 %v1141, 32
    %v1147 = vpop.permute.xlu0 %1146
    %vm1150 = vcmask 260102
    %1151 = vst.msk [vmem:[#allocation2] sm:$0x40] %vm1150, %v1145
    %1152 = vst.msk [vmem:[#allocation2 + $0x8] sm:$0x40] %vm1150, %v1147
    %v1153 = vrot.slane %v1140, 6
    %v1154 = vrot.slane %v1141, 5
    %v1155 = vsel %vm262, %v1154, %v1153
    %1156 = vrot.lane.b32.xlu0 %v1155, 32
    %v1157 = vpop.permute.xlu0 %1156
    %v1158 = vsel %vm37, %v1157, 0
    %1160 = vmatprep.subr.mxu0 0.0
    %1161 = vmatpush1.msra.mxu0 %v119
    %1162 = vmatprep.subr.mxu0 0.0
    %1163 = vmatpush1.msra.mxu0 %v120
    %1164 = vmatprep.subr.mxu0 0.0
    %1165 = vmatpush1.msra.mxu0 %v121
    %1166 = vmatprep.subr.mxu0 0.0
    %1167 = vmatpush1.msra.mxu0 %v122
    %1168 = vmatprep.subr.mxu0 0.0
    %1169 = vmatpush1.msra.mxu0 0.0
    %1170 = vmatprep.subr.mxu0 0.0
    %1171 = vmatpush1.msra.mxu0 0.0
    %1172 = vmatprep.subr.mxu0 0.0
    %1173 = vmatpush1.msra.mxu0 0.0
    %1174 = vmatprep.subr.mxu0 0.0
    %1175 = vmatpush1.msra.mxu0 0.0
    %1176 = vmatprep.subr.mxu0 0.0
    %1177 = vmatpush1.msra.mxu0 0.0
    %1178 = vmatprep.subr.mxu0 0.0
    %1179 = vmatpush1.msra.mxu0 0.0
    %1180 = vmatprep.subr.mxu0 0.0
    %1181 = vmatpush1.msra.mxu0 0.0
    %1182 = vmatprep.subr.mxu0 0.0
    %1183 = vmatpush1.msra.mxu0 0.0
    %1184 = vmatprep.subr.mxu0 0.0
    %1185 = vmatpush1.msra.mxu0 0.0
    %1186 = vmatprep.subr.mxu0 0.0
    %1187 = vmatpush1.msra.mxu0 0.0
    %1188 = vmatprep.subr.mxu0 0.0
    %1189 = vmatpush1.msra.mxu0 0.0
    %1190 = vmatprep.subr.mxu0 0.0
    %1191 = vmatpush1.msra.mxu0 0.0
    %1192 = vmatprep.subr.mxu0 0.0
    %1193 = vmatpush1.msra.mxu0 0.0
    %1194 = vmatprep.subr.mxu0 0.0
    %1195 = vmatpush1.msra.mxu0 0.0
    %1196 = vmatprep.subr.mxu0 0.0
    %1197 = vmatpush1.msra.mxu0 0.0
    %1198 = vmatprep.subr.mxu0 0.0
    %1199 = vmatpush1.msra.mxu0 0.0
    %1200 = vmatprep.subr.mxu0 0.0
    %1201 = vmatpush1.msra.mxu0 0.0
    %1202 = vmatprep.subr.mxu0 0.0
    %1203 = vmatpush1.msra.mxu0 0.0
    %1204 = vmatprep.subr.mxu0 0.0
    %1205 = vmatpush1.msra.mxu0 0.0
    %1206 = vmatprep.subr.mxu0 0.0
    %1207 = vmatpush1.msra.mxu0 0.0
    %1208 = vmatprep.subr.mxu0 0.0
    %1209 = vmatpush1.msra.mxu0 0.0
    %1210 = vmatprep.subr.mxu0 0.0
    %1211 = vmatpush1.msra.mxu0 0.0
    %1212 = vmatprep.subr.mxu0 0.0
    %1213 = vmatpush1.msra.mxu0 0.0
    %1214 = vmatprep.subr.mxu0 0.0
    %1215 = vmatpush1.msra.mxu0 0.0
    %1216 = vmatprep.subr.mxu0 0.0
    %1217 = vmatpush1.msra.mxu0 0.0
    %1218 = vmatprep.subr.mxu0 0.0
    %1219 = vmatpush1.msra.mxu0 0.0
    %1220 = vmatprep.subr.mxu0 0.0
    %1221 = vmatpush1.msra.mxu0 0.0
    %1222 = vmatprep.subr.mxu0 0.0
    %1223 = vmatpush1.msra.mxu0 0.0
    %1224 = vmatprep.mubr.f32.mxu0 0.0
    %1225 = vmatmul.mubr.f32.gmra.mrb[0].mxu0 %v1158
    %v1226 = vpop.f32.mrb[0].mxu0
    %v1227 = vadd.f32 0.0, %v1226
    %v1228 = vpop.f32.mrb[0].mxu0
    %1229 = vdwg.mxu0
    %v1231 = vrot.slane %v1227, 1
    %v1232 = vrot.slane %v1227, 2
    %v1235 = vadd.f32 %v111, %v1231
    %v1236 = vadd.f32 %v116, %v1232
    %v1237 = vxor.u32 %v1235, 2147483648
    %v1238 = vxor.u32 %v1236, 2147483648
    %v1239 = vmul.f32 %v1237, 1.442695
    %v1240 = vpow.pop %v1239
    %v1241 = vmul.f32 %v1238, 1.442695
    %v1242 = vpow.pop %v1241
    %v1243 = vadd.f32 %v1240, 1.0
    %v1244 = vadd.f32 %v1242, 1.0
    %v1245 = vrcp.pop %v1243
    %v1246 = vmul.f32 1.0, %v1245
    %v1247 = vrcp.pop %v1244
    %v1248 = vmul.f32 1.0, %v1247
    %v1249 = vtanh.pop %v1235
    %v1250 = vtanh.pop %v1236
    %v1253 = vrot.slane %v1128, 7
    %v1254 = vrot.slane %v1129, 7
    %v1257 = vmul.f32 %v1246, %v1253
    %v1258 = vmul.f32 %v1248, %v1254
    %1261 = vrot.lane.b32.xlu0 %v1249, 64
    %v1262 = vpop.permute.xlu0 %1261
    %1263 = vrot.lane.b32.xlu0 %v1250, 64
    %v1264 = vpop.permute.xlu0 %1263
    %v1267 = vmul.f32 %v1246, %v1262
    %v1268 = vmul.f32 %v1248, %v1264
    %1271 = vrot.lane.b32.xlu0 %v1267, 32
    %v1272 = vpop.permute.xlu0 %1271
    %1273 = vrot.lane.b32.xlu0 %v1268, 32
    %v1274 = vpop.permute.xlu0 %1273
    %v1277 = vadd.f32 %v1257, %v1272
    %v1278 = vadd.f32 %v1258, %v1274
    %v1279 = vtanh.pop %v1277
    %v1280 = vtanh.pop %v1278
    %1283 = vrot.lane.b32.xlu0 %v1279, 64
    %v1284 = vpop.permute.xlu0 %1283
    %1285 = vrot.lane.b32.xlu0 %v1280, 64
    %v1286 = vpop.permute.xlu0 %1285
    %v1289 = vmul.f32 %v1246, %v1284
    %v1290 = vmul.f32 %v1248, %v1286
    %1293 = vrot.lane.b32.xlu0 %v1289, 32
    %v1294 = vpop.permute.xlu0 %1293
    %1295 = vrot.lane.b32.xlu0 %v1290, 32
    %v1296 = vpop.permute.xlu0 %1295
    %vm1299 = vcmask 261127
    %1300 = vst.msk [vmem:[#allocation2] sm:$0x80] %vm1299, %v1294
    %1301 = vst.msk [vmem:[#allocation2 + $0x8] sm:$0x80] %vm1299, %v1296
    %v1302 = vld [vmem:[#allocation2] sm:$0xff]
    %v1303 = vld [vmem:[#allocation2 + $0x8] sm:$0xff]
    %v1304 = vrot.slane %v1289, 7
    %1305 = vrot.lane.b32.xlu0 %v1304, 32
    %v1306 = vpop.permute.xlu0 %1305
    %v1307 = vsel %vm37, %v1306, 0
    %v1310 = vsel %vm37, %v1302, 0
    %1312 = vmatprep.subr.mxu0 0.0
    %1313 = vmatpush1.xpose.msra.mxu0 %v1310
    %1314 = vmatprep.subr.mxu0 0.0
    %1315 = vmatpush1.xpose.msra.mxu0 0.0
    %1316 = vmatprep.subr.mxu0 0.0
    %1317 = vmatpush1.xpose.msra.mxu0 0.0
    %1318 = vmatprep.subr.mxu0 0.0
    %1319 = vmatpush1.xpose.msra.mxu0 0.0
    %1320 = vmatprep.subr.mxu0 0.0
    %1321 = vmatpush1.xpose.msra.mxu0 0.0
    %1322 = vmatprep.subr.mxu0 0.0
    %1323 = vmatpush1.xpose.msra.mxu0 0.0
    %1324 = vmatprep.subr.mxu0 0.0
    %1325 = vmatpush1.xpose.msra.mxu0 0.0
    %1326 = vmatprep.subr.mxu0 0.0
    %1327 = vmatpush1.xpose.msra.mxu0 0.0
    %1328 = vmatprep.subr.mxu0 0.0
    %1329 = vmatpush1.xpose.msra.mxu0 0.0
    %1330 = vmatprep.subr.mxu0 0.0
    %1331 = vmatpush1.xpose.msra.mxu0 0.0
    %1332 = vmatprep.subr.mxu0 0.0
    %1333 = vmatpush1.xpose.msra.mxu0 0.0
    %1334 = vmatprep.subr.mxu0 0.0
    %1335 = vmatpush1.xpose.msra.mxu0 0.0
    %1336 = vmatprep.subr.mxu0 0.0
    %1337 = vmatpush1.xpose.msra.mxu0 0.0
    %1338 = vmatprep.subr.mxu0 0.0
    %1339 = vmatpush1.xpose.msra.mxu0 0.0
    %1340 = vmatprep.subr.mxu0 0.0
    %1341 = vmatpush1.xpose.msra.mxu0 0.0
    %1342 = vmatprep.subr.mxu0 0.0
    %1343 = vmatpush1.xpose.msra.mxu0 0.0
    %1344 = vmatprep.subr.mxu0 0.0
    %1345 = vmatpush1.xpose.msra.mxu0 0.0
    %1346 = vmatprep.subr.mxu0 0.0
    %1347 = vmatpush1.xpose.msra.mxu0 0.0
    %1348 = vmatprep.subr.mxu0 0.0
    %1349 = vmatpush1.xpose.msra.mxu0 0.0
    %1350 = vmatprep.subr.mxu0 0.0
    %1351 = vmatpush1.xpose.msra.mxu0 0.0
    %1352 = vmatprep.subr.mxu0 0.0
    %1353 = vmatpush1.xpose.msra.mxu0 0.0
    %1354 = vmatprep.subr.mxu0 0.0
    %1355 = vmatpush1.xpose.msra.mxu0 0.0
    %1356 = vmatprep.subr.mxu0 0.0
    %1357 = vmatpush1.xpose.msra.mxu0 0.0
    %1358 = vmatprep.subr.mxu0 0.0
    %1359 = vmatpush1.xpose.msra.mxu0 0.0
    %1360 = vmatprep.subr.mxu0 0.0
    %1361 = vmatpush1.xpose.msra.mxu0 0.0
    %1362 = vmatprep.subr.mxu0 0.0
    %1363 = vmatpush1.xpose.msra.mxu0 0.0
    %1364 = vmatprep.subr.mxu0 0.0
    %1365 = vmatpush1.xpose.msra.mxu0 0.0
    %1366 = vmatprep.subr.mxu0 0.0
    %1367 = vmatpush1.xpose.msra.mxu0 0.0
    %1368 = vmatprep.subr.mxu0 0.0
    %1369 = vmatpush1.xpose.msra.mxu0 0.0
    %1370 = vmatprep.subr.mxu0 0.0
    %1371 = vmatpush1.xpose.msra.mxu0 0.0
    %1372 = vmatprep.subr.mxu0 0.0
    %1373 = vmatpush1.xpose.msra.mxu0 0.0
    %1374 = vmatprep.subr.mxu0 0.0
    %1375 = vmatpush1.xpose.msra.mxu0 0.0
    %1376 = vmatprep.mubr.f32.mxu0 0.0
    %1377 = vmatmul.mubr.f32.gmra.mrb[0].mxu0 %v1307
    %v1378 = vpop.f32.mrb[0].mxu0
    %v1379 = vadd.f32 0.0, %v1378
    %v1380 = vpop.f32.mrb[0].mxu0
    %1381 = vdwg.mxu0
    %v1382 = vrot.slane %v1290, 7
    %1383 = vrot.lane.b32.xlu0 %v1382, 32
    %v1384 = vpop.permute.xlu0 %1383
    %v1385 = vsel %vm37, %v1384, 0
    %v1388 = vsel %vm37, %v1303, 0
    %1390 = vmatprep.subr.mxu0 0.0
    %1391 = vmatpush1.xpose.msra.mxu0 %v1388
    %1392 = vmatprep.subr.mxu0 0.0
    %1393 = vmatpush1.xpose.msra.mxu0 0.0
    %1394 = vmatprep.subr.mxu0 0.0
    %1395 = vmatpush1.xpose.msra.mxu0 0.0
    %1396 = vmatprep.subr.mxu0 0.0
    %1397 = vmatpush1.xpose.msra.mxu0 0.0
    %1398 = vmatprep.subr.mxu0 0.0
    %1399 = vmatpush1.xpose.msra.mxu0 0.0
    %1400 = vmatprep.subr.mxu0 0.0
    %1401 = vmatpush1.xpose.msra.mxu0 0.0
    %1402 = vmatprep.subr.mxu0 0.0
    %1403 = vmatpush1.xpose.msra.mxu0 0.0
    %1404 = vmatprep.subr.mxu0 0.0
    %1405 = vmatpush1.xpose.msra.mxu0 0.0
    %1406 = vmatprep.subr.mxu0 0.0
    %1407 = vmatpush1.xpose.msra.mxu0 0.0
    %1408 = vmatprep.subr.mxu0 0.0
    %1409 = vmatpush1.xpose.msra.mxu0 0.0
    %1410 = vmatprep.subr.mxu0 0.0
    %1411 = vmatpush1.xpose.msra.mxu0 0.0
    %1412 = vmatprep.subr.mxu0 0.0
    %1413 = vmatpush1.xpose.msra.mxu0 0.0
    %1414 = vmatprep.subr.mxu0 0.0
    %1415 = vmatpush1.xpose.msra.mxu0 0.0
    %1416 = vmatprep.subr.mxu0 0.0
    %1417 = vmatpush1.xpose.msra.mxu0 0.0
    %1418 = vmatprep.subr.mxu0 0.0
    %1419 = vmatpush1.xpose.msra.mxu0 0.0
    %1420 = vmatprep.subr.mxu0 0.0
    %1421 = vmatpush1.xpose.msra.mxu0 0.0
    %1422 = vmatprep.subr.mxu0 0.0
    %1423 = vmatpush1.xpose.msra.mxu0 0.0
    %1424 = vmatprep.subr.mxu0 0.0
    %1425 = vmatpush1.xpose.msra.mxu0 0.0
    %1426 = vmatprep.subr.mxu0 0.0
    %1427 = vmatpush1.xpose.msra.mxu0 0.0
    %1428 = vmatprep.subr.mxu0 0.0
    %1429 = vmatpush1.xpose.msra.mxu0 0.0
    %1430 = vmatprep.subr.mxu0 0.0
    %1431 = vmatpush1.xpose.msra.mxu0 0.0
    %1432 = vmatprep.subr.mxu0 0.0
    %1433 = vmatpush1.xpose.msra.mxu0 0.0
    %1434 = vmatprep.subr.mxu0 0.0
    %1435 = vmatpush1.xpose.msra.mxu0 0.0
    %1436 = vmatprep.subr.mxu0 0.0
    %1437 = vmatpush1.xpose.msra.mxu0 0.0
    %1438 = vmatprep.subr.mxu0 0.0
    %1439 = vmatpush1.xpose.msra.mxu0 0.0
    %1440 = vmatprep.subr.mxu0 0.0
    %1441 = vmatpush1.xpose.msra.mxu0 0.0
    %1442 = vmatprep.subr.mxu0 0.0
    %1443 = vmatpush1.xpose.msra.mxu0 0.0
    %1444 = vmatprep.subr.mxu0 0.0
    %1445 = vmatpush1.xpose.msra.mxu0 0.0
    %1446 = vmatprep.subr.mxu0 0.0
    %1447 = vmatpush1.xpose.msra.mxu0 0.0
    %1448 = vmatprep.subr.mxu0 0.0
    %1449 = vmatpush1.xpose.msra.mxu0 0.0
    %1450 = vmatprep.subr.mxu0 0.0
    %1451 = vmatpush1.xpose.msra.mxu0 0.0
    %1452 = vmatprep.subr.mxu0 0.0
    %1453 = vmatpush1.xpose.msra.mxu0 0.0
    %1454 = vmatprep.mubr.f32.mxu0 0.0
    %1455 = vmatmul.mubr.f32.gmra.mrb[0].mxu0 %v1385
    %v1456 = vpop.f32.mrb[0].mxu0
    %v1457 = vadd.f32 0.0, %v1456
    %v1458 = vpop.f32.mrb[0].mxu0
    %1459 = vdwg.mxu0
    %vm1460 = vcmask 57344
    %v1461 = vsel %vm1460, %v1379, -inf
    %1462 = vmax.xlane.f32.xlu0 %v1461
    %v1463 = vpop.xlane.xlu0 %1462
    %v1464 = vsel %vm1460, %v1457, -inf
    %1465 = vmax.xlane.f32.xlu0 %v1464
    %v1466 = vpop.xlane.xlu0 %1465
    %v1467 = vsub.f32 %v1379, %v1463
    %v1468 = vsub.f32 %v1457, %v1466
    %v1469 = vmul.f32 %v1467, 1.442695
    %v1470 = vpow.pop %v1469
    %v1471 = vmul.f32 %v1468, 1.442695
    %v1472 = vpow.pop %v1471
    %v1473 = vsel %vm1460, %v1470, 0.0
    %1474 = vadd.xlane.f32.xlu0 %v1473
    %v1475 = vpop.xlane.xlu0 %1474
    %v1476 = vsel %vm1460, %v1472, 0.0
    %1477 = vadd.xlane.f32.xlu0 %v1476
    %v1478 = vpop.xlane.xlu0 %1477
    %v1479 = vrcp.pop %v1475
    %v1480 = vmul.f32 %v1470, %v1479
    %v1481 = vrcp.pop %v1478
    %v1482 = vmul.f32 %v1472, %v1481
    %vm1483 = vcmask 64512
    %v1485 = vsel %vm1483, %v1480, 0
    %1487 = vmatprep.subr.mxu0 0.0
    %1488 = vmatpush1.msra.mxu0 %v1302
    %1489 = vmatprep.subr.mxu0 0.0
    %1490 = vmatpush1.msra.mxu0 0.0
    %1491 = vmatprep.subr.mxu0 0.0
    %1492 = vmatpush1.msra.mxu0 0.0
    %1493 = vmatprep.subr.mxu0 0.0
    %1494 = vmatpush1.msra.mxu0 0.0
    %1495 = vmatprep.subr.mxu0 0.0
    %1496 = vmatpush1.msra.mxu0 0.0
    %1497 = vmatprep.subr.mxu0 0.0
    %1498 = vmatpush1.msra.mxu0 0.0
    %1499 = vmatprep.subr.mxu0 0.0
    %1500 = vmatpush1.msra.mxu0 0.0
    %1501 = vmatprep.subr.mxu0 0.0
    %1502 = vmatpush1.msra.mxu0 0.0
    %1503 = vmatprep.subr.mxu0 0.0
    %1504 = vmatpush1.msra.mxu0 0.0
    %1505 = vmatprep.subr.mxu0 0.0
    %1506 = vmatpush1.msra.mxu0 0.0
    %1507 = vmatprep.subr.mxu0 0.0
    %1508 = vmatpush1.msra.mxu0 0.0
    %1509 = vmatprep.subr.mxu0 0.0
    %1510 = vmatpush1.msra.mxu0 0.0
    %1511 = vmatprep.subr.mxu0 0.0
    %1512 = vmatpush1.msra.mxu0 0.0
    %1513 = vmatprep.subr.mxu0 0.0
    %1514 = vmatpush1.msra.mxu0 0.0
    %1515 = vmatprep.subr.mxu0 0.0
    %1516 = vmatpush1.msra.mxu0 0.0
    %1517 = vmatprep.subr.mxu0 0.0
    %1518 = vmatpush1.msra.mxu0 0.0
    %1519 = vmatprep.subr.mxu0 0.0
    %1520 = vmatpush1.msra.mxu0 0.0
    %1521 = vmatprep.subr.mxu0 0.0
    %1522 = vmatpush1.msra.mxu0 0.0
    %1523 = vmatprep.subr.mxu0 0.0
    %1524 = vmatpush1.msra.mxu0 0.0
    %1525 = vmatprep.subr.mxu0 0.0
    %1526 = vmatpush1.msra.mxu0 0.0
    %1527 = vmatprep.subr.mxu0 0.0
    %1528 = vmatpush1.msra.mxu0 0.0
    %1529 = vmatprep.subr.mxu0 0.0
    %1530 = vmatpush1.msra.mxu0 0.0
    %1531 = vmatprep.subr.mxu0 0.0
    %1532 = vmatpush1.msra.mxu0 0.0
    %1533 = vmatprep.subr.mxu0 0.0
    %1534 = vmatpush1.msra.mxu0 0.0
    %1535 = vmatprep.subr.mxu0 0.0
    %1536 = vmatpush1.msra.mxu0 0.0
    %1537 = vmatprep.subr.mxu0 0.0
    %1538 = vmatpush1.msra.mxu0 0.0
    %1539 = vmatprep.subr.mxu0 0.0
    %1540 = vmatpush1.msra.mxu0 0.0
    %1541 = vmatprep.subr.mxu0 0.0
    %1542 = vmatpush1.msra.mxu0 0.0
    %1543 = vmatprep.subr.mxu0 0.0
    %1544 = vmatpush1.msra.mxu0 0.0
    %1545 = vmatprep.subr.mxu0 0.0
    %1546 = vmatpush1.msra.mxu0 0.0
    %1547 = vmatprep.subr.mxu0 0.0
    %1548 = vmatpush1.msra.mxu0 0.0
    %1549 = vmatprep.subr.mxu0 0.0
    %1550 = vmatpush1.msra.mxu0 0.0
    %1551 = vmatprep.mubr.f32.mxu0 0.0
    %1552 = vmatmul.mubr.f32.gmra.mrb[0].mxu0 %v1485
    %v1553 = vpop.f32.mrb[0].mxu0
    %v1554 = vadd.f32 0.0, %v1553
    %v1555 = vpop.f32.mrb[0].mxu0
    %1556 = vdwg.mxu0
    %v1558 = vsel %vm1483, %v1482, 0
    %1560 = vmatprep.subr.mxu0 0.0
    %1561 = vmatpush1.msra.mxu0 %v1303
    %1562 = vmatprep.subr.mxu0 0.0
    %1563 = vmatpush1.msra.mxu0 0.0
    %1564 = vmatprep.subr.mxu0 0.0
    %1565 = vmatpush1.msra.mxu0 0.0
    %1566 = vmatprep.subr.mxu0 0.0
    %1567 = vmatpush1.msra.mxu0 0.0
    %1568 = vmatprep.subr.mxu0 0.0
    %1569 = vmatpush1.msra.mxu0 0.0
    %1570 = vmatprep.subr.mxu0 0.0
    %1571 = vmatpush1.msra.mxu0 0.0
    %1572 = vmatprep.subr.mxu0 0.0
    %1573 = vmatpush1.msra.mxu0 0.0
    %1574 = vmatprep.subr.mxu0 0.0
    %1575 = vmatpush1.msra.mxu0 0.0
    %1576 = vmatprep.subr.mxu0 0.0
    %1577 = vmatpush1.msra.mxu0 0.0
    %1578 = vmatprep.subr.mxu0 0.0
    %1579 = vmatpush1.msra.mxu0 0.0
    %1580 = vmatprep.subr.mxu0 0.0
    %1581 = vmatpush1.msra.mxu0 0.0
    %1582 = vmatprep.subr.mxu0 0.0
    %1583 = vmatpush1.msra.mxu0 0.0
    %1584 = vmatprep.subr.mxu0 0.0
    %1585 = vmatpush1.msra.mxu0 0.0
    %1586 = vmatprep.subr.mxu0 0.0
    %1587 = vmatpush1.msra.mxu0 0.0
    %1588 = vmatprep.subr.mxu0 0.0
    %1589 = vmatpush1.msra.mxu0 0.0
    %1590 = vmatprep.subr.mxu0 0.0
    %1591 = vmatpush1.msra.mxu0 0.0
    %1592 = vmatprep.subr.mxu0 0.0
    %1593 = vmatpush1.msra.mxu0 0.0
    %1594 = vmatprep.subr.mxu0 0.0
    %1595 = vmatpush1.msra.mxu0 0.0
    %1596 = vmatprep.subr.mxu0 0.0
    %1597 = vmatpush1.msra.mxu0 0.0
    %1598 = vmatprep.subr.mxu0 0.0
    %1599 = vmatpush1.msra.mxu0 0.0
    %1600 = vmatprep.subr.mxu0 0.0
    %1601 = vmatpush1.msra.mxu0 0.0
    %1602 = vmatprep.subr.mxu0 0.0
    %1603 = vmatpush1.msra.mxu0 0.0
    %1604 = vmatprep.subr.mxu0 0.0
    %1605 = vmatpush1.msra.mxu0 0.0
    %1606 = vmatprep.subr.mxu0 0.0
    %1607 = vmatpush1.msra.mxu0 0.0
    %1608 = vmatprep.subr.mxu0 0.0
    %1609 = vmatpush1.msra.mxu0 0.0
    %1610 = vmatprep.subr.mxu0 0.0
    %1611 = vmatpush1.msra.mxu0 0.0
    %1612 = vmatprep.subr.mxu0 0.0
    %1613 = vmatpush1.msra.mxu0 0.0
    %1614 = vmatprep.subr.mxu0 0.0
    %1615 = vmatpush1.msra.mxu0 0.0
    %1616 = vmatprep.subr.mxu0 0.0
    %1617 = vmatpush1.msra.mxu0 0.0
    %1618 = vmatprep.subr.mxu0 0.0
    %1619 = vmatpush1.msra.mxu0 0.0
    %1620 = vmatprep.subr.mxu0 0.0
    %1621 = vmatpush1.msra.mxu0 0.0
    %1622 = vmatprep.subr.mxu0 0.0
    %1623 = vmatpush1.msra.mxu0 0.0
    %1624 = vmatprep.mubr.f32.mxu0 0.0
    %1625 = vmatmul.mubr.f32.gmra.mrb[0].mxu0 %v1558
    %v1626 = vpop.f32.mrb[0].mxu0
    %v1627 = vadd.f32 0.0, %v1626
    %v1628 = vpop.f32.mrb[0].mxu0
    %1629 = vdwg.mxu0
    %v1630 = vld [vmem:[%s4] sm:$0xff]
    %v1631 = vld [vmem:[%s4 + $0x8] sm:$0xff]
    %v1632 = vld [vmem:[%s4 + $0x10] sm:$0xff]
    %v1633 = vld [vmem:[%s4 + $0x18] sm:$0xff]
    %v1634 = vld [vmem:[%s5] sm:$0x1]
    %v1636 = vlaneseq
    %v1637 = vshrl.u32 %v1636, 7
    %v1638 = vsub.s32 0, %v1637
    %v1639 = vrot.slane %v1634, %v1638
    %v1643 = vrot.slane %v1627, 7
    %v1644 = vsel %vm262, %v1643, %v1554
    %v1645 = vsel %vm37, %v1644, 0
    %1647 = vmatprep.subr.mxu0 0.0
    %1648 = vmatpush1.msra.mxu0 %v1630
    %1649 = vmatprep.subr.mxu0 0.0
    %1650 = vmatpush1.msra.mxu0 %v1631
    %1651 = vmatprep.subr.mxu0 0.0
    %1652 = vmatpush1.msra.mxu0 %v1632
    %1653 = vmatprep.subr.mxu0 0.0
    %1654 = vmatpush1.msra.mxu0 %v1633
    %1655 = vmatprep.subr.mxu0 0.0
    %1656 = vmatpush1.msra.mxu0 0.0
    %1657 = vmatprep.subr.mxu0 0.0
    %1658 = vmatpush1.msra.mxu0 0.0
    %1659 = vmatprep.subr.mxu0 0.0
    %1660 = vmatpush1.msra.mxu0 0.0
    %1661 = vmatprep.subr.mxu0 0.0
    %1662 = vmatpush1.msra.mxu0 0.0
    %1663 = vmatprep.subr.mxu0 0.0
    %1664 = vmatpush1.msra.mxu0 0.0
    %1665 = vmatprep.subr.mxu0 0.0
    %1666 = vmatpush1.msra.mxu0 0.0
    %1667 = vmatprep.subr.mxu0 0.0
    %1668 = vmatpush1.msra.mxu0 0.0
    %1669 = vmatprep.subr.mxu0 0.0
    %1670 = vmatpush1.msra.mxu0 0.0
    %1671 = vmatprep.subr.mxu0 0.0
    %1672 = vmatpush1.msra.mxu0 0.0
    %1673 = vmatprep.subr.mxu0 0.0
    %1674 = vmatpush1.msra.mxu0 0.0
    %1675 = vmatprep.subr.mxu0 0.0
    %1676 = vmatpush1.msra.mxu0 0.0
    %1677 = vmatprep.subr.mxu0 0.0
    %1678 = vmatpush1.msra.mxu0 0.0
    %1679 = vmatprep.subr.mxu0 0.0
    %1680 = vmatpush1.msra.mxu0 0.0
    %1681 = vmatprep.subr.mxu0 0.0
    %1682 = vmatpush1.msra.mxu0 0.0
    %1683 = vmatprep.subr.mxu0 0.0
    %1684 = vmatpush1.msra.mxu0 0.0
    %1685 = vmatprep.subr.mxu0 0.0
    %1686 = vmatpush1.msra.mxu0 0.0
    %1687 = vmatprep.subr.mxu0 0.0
    %1688 = vmatpush1.msra.mxu0 0.0
    %1689 = vmatprep.subr.mxu0 0.0
    %1690 = vmatpush1.msra.mxu0 0.0
    %1691 = vmatprep.subr.mxu0 0.0
    %1692 = vmatpush1.msra.mxu0 0.0
    %1693 = vmatprep.subr.mxu0 0.0
    %1694 = vmatpush1.msra.mxu0 0.0
    %1695 = vmatprep.subr.mxu0 0.0
    %1696 = vmatpush1.msra.mxu0 0.0
    %1697 = vmatprep.subr.mxu0 0.0
    %1698 = vmatpush1.msra.mxu0 0.0
    %1699 = vmatprep.subr.mxu0 0.0
    %1700 = vmatpush1.msra.mxu0 0.0
    %1701 = vmatprep.subr.mxu0 0.0
    %1702 = vmatpush1.msra.mxu0 0.0
    %1703 = vmatprep.subr.mxu0 0.0
    %1704 = vmatpush1.msra.mxu0 0.0
    %1705 = vmatprep.subr.mxu0 0.0
    %1706 = vmatpush1.msra.mxu0 0.0
    %1707 = vmatprep.subr.mxu0 0.0
    %1708 = vmatpush1.msra.mxu0 0.0
    %1709 = vmatprep.subr.mxu0 0.0
    %1710 = vmatpush1.msra.mxu0 0.0
    %1711 = vmatprep.mubr.f32.mxu0 0.0
    %1712 = vmatmul.mubr.f32.gmra.mrb[0].mxu0 %v1645
    %v1713 = vpop.f32.mrb[0].mxu0
    %v1714 = vadd.f32 %v1639, %v1713
    %v1715 = vpop.f32.mrb[0].mxu0
    %1716 = vdwg.mxu0
    %1717 = vst [vmem:[#allocation3] sm:$0x3] %v1714
    // Predicated region
    $region26: #{attention_model_forward.1} parent=1 // pred_check
      _
    $region27: #{attention_model_forward.1} parent=1 // pred_check_branch
      %1719 = sbr.rel (0) target = $region29
    $region28: #{attention_model_forward.1} parent=1 // pred_region
      %s1721 = ssub.s32 32, 32
      %1722 = vsyncadd [#allocation4], %s1721
      %s1724 = sshll.u32 [#allocation3], 4
      %s1725 = int_to_ptr.vmem [resolvable:$true] %s1724
      %1727 = dma.vmem_to_hbm [thread:$0]  %s1725, 32, %s6, [#allocation4]
    $region29: #{attention_model_forward.1} parent=1 // pred_fallthru
      _
    // Predicated region
    $region30: #{attention_model_forward.1} parent=1 // pred_check
      _
    $region31: #{attention_model_forward.1} parent=1 // pred_check_branch
      %1729 = sbr.rel (0) target = $region33
    $region32: #{attention_model_forward.1} parent=1 // pred_region
      %1730 = dma.done [#allocation4], 32
    $region33: #{attention_model_forward.1} parent=1 // pred_fallthru
      _
    %1731 = vsyncpa [#allocation4], 1

</llo_original>
